<compile_context>
chip_gen: v7x
topology: tpu7x:2x2x1
jax: 0.10.0
libtpu: 0.0.40
codegen_flags: <defaults>
</compile_context>

<pallas_src>
import jax
import jax.numpy as jnp
from jax.experimental import pallas as pl
from jax.experimental.pallas import tpu as pltpu

# ------------------------- problem sizes ----------------------------------------
N = 64            # nodes per graph
F_IN = 16         # input feature dim (input_dim)
H = 32            # hidden dim (config.model.mp.dim)
R = 2             # num_adjacencies (num_relations)
N_MP = 2          # config.model.mp.n_layers
E_PER_REL = 256   # synthetic edges per relation per graph
B_GRAPHS = 8      # batched graphs (leading grid axis)
LN_EPS = 1e-5
OUT_LANES = 128   # lane-dense kernel output; wrapper slices back to (N, 1)

# -------- packed bf16 matmul-weight buffer (row offsets, multiples of 16) --------
ROW_PW0 = 0                    # (F_IN, H) pre_mp linear 0
ROW_PW1 = ROW_PW0 + F_IN       # (H, H)    pre_mp linear 1
ROW_WF0 = ROW_PW1 + H          # (3H, H)   mp layer 0 fused [root; W_r0; W_r1]
ROW_WF1 = ROW_WF0 + (R + 1)*H  # (3H, H)   mp layer 1 fused
ROW_QW0 = ROW_WF1 + (R + 1)*H  # (H, H)    post_mp linear 0
ROW_QW1 = ROW_QW0 + H          # (H, H)    post_mp linear 1 (cols H//2: zero pad)
W_ROWS = ROW_QW1 + H           # 304 rows, 32 cols, bf16

# -------- packed f32 vector buffer (biases / LN affine / final row) --------------
V_PB0, V_PB1 = 0, 1
V_MB0, V_LN0W, V_LN0B = 2, 3, 4
V_MB1, V_LN1W, V_LN1B = 5, 6, 7
V_QB0, V_QB1, V_QW2, V_QB2 = 8, 9, 10, 11
V_ROWS = 16                    # padded to a multiple of 8 sublanes


# ------------------------------- Pallas kernel ----------------------------------
def gene_net_kernel(x_ref, adj_ref, w_ref, v_ref, out_ref):
    f32 = jnp.float32
    bf16 = jnp.bfloat16

    x = x_ref[...]                         # (N, F_IN) f32, this graph's features
    adj2 = adj_ref[...]                    # (R*N, N) bf16, row-normalized adjacency

    V = v_ref[...]                         # (16, H) f32 row vectors

    def vec(i):
        return V[i:i + 1, :]               # (1, H) f32

    inv_cnt = 1.0 / float(N * H)

    # ---- pre_mp: Linear(F_IN,H)+ReLU, Linear(H,H)+ReLU ---- (bf16 MXU, f32 acc)
    h = jnp.maximum(
        jnp.dot(x.astype(bf16), w_ref[ROW_PW0:ROW_PW0 + F_IN, :],
                preferred_element_type=f32) + vec(V_PB0), 0.0)
    h = jnp.maximum(
        jnp.dot(h.astype(bf16), w_ref[ROW_PW1:ROW_PW1 + H, :],
                preferred_element_type=f32) + vec(V_PB1), 0.0)

    def rgcn_relu_ln(h, wf_row, bias, lnw, lnb):
        # RGCNConv(aggr='mean', num_bases=1, root_weight=True, bias=True):
        #   out_i = x_i @ root + b + sum_r mean_{j in N_r(i)} x_j @ W_r
        # (1) all relations aggregated with a single (R*N, N) @ (N, H) bf16 matmul
        agg = jnp.dot(adj2, h.astype(bf16), preferred_element_type=f32)   # (R*N, H)
        # (2) root + relation projections fused into one K = (R+1)*H matmul
        #     (on v7x, MRB-accumulating 3-dot form would remove this lane concat)
        cat = jnp.concatenate(
            [h] + [agg[r * N:(r + 1) * N, :] for r in range(R)],
            axis=-1).astype(bf16)                                          # (N, 3H)
        wf = w_ref[wf_row:wf_row + (R + 1) * H, :]                         # (3H, H)
        out = jnp.dot(cat, wf, preferred_element_type=f32) + bias
        out = jnp.maximum(out, 0.0)                                        # act (ReLU)
        # pyg_nn.LayerNorm, mode='graph', batch=None:
        #   (x - x.mean()) / (x.std(unbiased=False) + eps) * weight + bias
        # Fused form: two INDEPENDENT full reductions (overlap on XLUs); the
        # E[x^2]-mean^2 cancellation risk is guarded with max(.,0).  Scalar
        # 1/(std+eps) goes to the EUP (approx reciprocal) and is folded into the
        # (1,H) affine row, so per-element work is sub, mul, add.
        s1 = jnp.sum(out)                                  # scalar
        s2 = jnp.sum(out * out)                            # scalar (independent)
        mean = s1 * inv_cnt
        var = jnp.maximum(s2 * inv_cnt - mean * mean, 0.0)
        denom = jnp.sqrt(var) + LN_EPS                     # std_biased + eps (PyG)
        inv_row = pl.reciprocal(jnp.broadcast_to(denom, (1, H)), approx=True)
        scale = lnw * inv_row                              # (1, H)
        return (out - mean) * scale + lnb

    # ---- mp layer 0 / 1: RGCNConv -> ReLU -> LayerNorm(graph) ----
    h = rgcn_relu_ln(h, ROW_WF0, vec(V_MB0), vec(V_LN0W), vec(V_LN0B))
    h = rgcn_relu_ln(h, ROW_WF1, vec(V_MB1), vec(V_LN1W), vec(V_LN1B))

    # ---- post_mp: Linear(H,H)+ReLU, Linear(H,H//2)+ReLU, Linear(H//2,1) ----
    h = jnp.maximum(
        jnp.dot(h.astype(bf16), w_ref[ROW_QW0:ROW_QW0 + H, :],
                preferred_element_type=f32) + vec(V_QB0), 0.0)
    # second post_mp linear is zero-padded from H//2 to H output cols; the padded
    # columns stay exactly zero through the ReLU (zero weight + zero bias).
    h = jnp.maximum(
        jnp.dot(h.astype(bf16), w_ref[ROW_QW1:ROW_QW1 + H, :],
                preferred_element_type=f32) + vec(V_QB1), 0.0)
    # final (H//2 -> 1) projection on VPU/XLU: multiply by the zero-padded weight
    # row and lane-reduce; avoids a width-1 MXU matmul and its FIFO pop.
    score = (jnp.sum(h * vec(V_QW2), axis=-1, keepdims=True)
             + V[V_QB2:V_QB2 + 1, 0:1])                                   # (N, 1)
    # lane-dense unmasked store: broadcast the per-node scalar across 128 lanes;
    # the wrapper slices back to (N, 1).
    out_ref[...] = jnp.broadcast_to(score, (N, OUT_LANES))


# ------------------------------- wrapper -----------------------------------------
@jax.jit
def relational_gene_network(x_b, adj_b, w_packed, v_packed):
    """x_b: (B*N, F_IN) f32   adj_b: (B*R*N, N) bf16
    w_packed: (W_ROWS, H) bf16   v_packed: (V_ROWS, H) f32   ->  (B, N, 1) f32"""
    B = x_b.shape[0] // N

    flops_per_graph = (
        2 * N * F_IN * H + 2 * N * H * H                              # pre_mp
        + N_MP * (2 * R * N * N * H + 2 * N * (R + 1) * H * H)        # mp layers
        + 2 * (2 * N * H * H) + 2 * N * H)                            # post_mp
    bytes_accessed = int(x_b.size * 4 + adj_b.size * 2
                         + w_packed.size * 2 + v_packed.size * 4
                         + B * N * OUT_LANES * 4)

    out_wide = pl.pallas_call(
        gene_net_kernel,
        out_shape=jax.ShapeDtypeStruct((B * N, OUT_LANES), jnp.float32),
        grid=(B,),
        in_specs=[
            pl.BlockSpec((N, F_IN), lambda b: (b, 0)),       # per-graph features
            pl.BlockSpec((R * N, N), lambda b: (b, 0)),      # per-graph adjacency
            pl.BlockSpec((W_ROWS, H), lambda b: (0, 0)),     # weights: constant block (VMEM-resident)
            pl.BlockSpec((V_ROWS, H), lambda b: (0, 0)),     # vectors: constant block
        ],
        out_specs=pl.BlockSpec((N, OUT_LANES), lambda b: (b, 0)),
        compiler_params=pltpu.CompilerParams(
            dimension_semantics=("parallel",)),               # megacore sharding on v7x
        cost_estimate=pl.CostEstimate(
            flops=B * flops_per_graph,
            transcendentals=4 * B,
            bytes_accessed=bytes_accessed),
    )(x_b, adj_b, w_packed, v_packed)

    # Lane-dense kernel output; the narrow slice stays inside this jit so XLA
    # fuses it with the surrounding program (no standalone slice dispatch).
    return out_wide.reshape(B, N, OUT_LANES)[:, :, :1]


# ------------------------------- parameter init ----------------------------------
def _init_linear(key, fan_in, fan_out):
    kw, kb = jax.random.split(key)
    scale = 1.0 / jnp.sqrt(jnp.float32(fan_in))
    w = jax.random.uniform(kw, (fan_in, fan_out), jnp.float32, -scale, scale)
    b = jax.random.uniform(kb, (1, fan_out), jnp.float32, -scale, scale)
    return w, b


def init_params(key):
    keys = jax.random.split(key, 9)
    params = []
    # pre_mp
    w, b = _init_linear(keys[0], F_IN, H); params += [w, b]
    w, b = _init_linear(keys[1], H, H);    params += [w, b]
    # mp layers: RGCNConv(num_bases=1) -> relation weights = comp (R,1) x basis (1,H,H)
    for li in range(N_MP):
        k = jax.random.split(keys[2 + li], 3)
        root = jax.random.normal(k[0], (H, H), jnp.float32) / jnp.sqrt(jnp.float32(H))
        comp = jax.random.normal(k[1], (R, 1), jnp.float32)
        basis = jax.random.normal(k[2], (1, H, H), jnp.float32) / jnp.sqrt(jnp.float32(H))
        relw = jnp.einsum('rb,bio->rio', comp, basis)        # (R, H, H)
        bias = jnp.zeros((1, H), jnp.float32)
        ln_w = jnp.ones((1, H), jnp.float32)                 # LayerNorm affine weight
        ln_b = jnp.zeros((1, H), jnp.float32)                # LayerNorm affine bias
        params += [root, relw, bias, ln_w, ln_b]
    # post_mp
    w, b = _init_linear(keys[6], H, H);       params += [w, b]
    w, b = _init_linear(keys[7], H, H // 2);  params += [w, b]
    w, b = _init_linear(keys[8], H // 2, 1);  params += [w, b]
    return params


def pack_params(params):
    """Pack parameters into two buffers (two input DMAs total, both VMEM-resident
    across the whole grid):
      * (W_ROWS, H) bf16 matmul weights with 16-aligned row blocks; RGCN root +
        relation weights are stacked into the fused (3H, H) block used by the
        K=3H matmul in the kernel.
      * (V_ROWS, H) f32 row vectors: biases, LayerNorm affine, final weight row."""
    (pw0, pb0, pw1, pb1,
     root0, rel0, mb0, ln0w, ln0b,
     root1, rel1, mb1, ln1w, ln1b,
     qw0, qb0, qw1, qb1, qw2, qb2) = params

    def row(v):
        v = jnp.asarray(v, jnp.float32).reshape(1, -1)
        return jnp.pad(v, ((0, 0), (0, H - v.shape[1])))

    wf0 = jnp.concatenate([root0] + [rel0[r] for r in range(R)], axis=0)   # (3H, H)
    wf1 = jnp.concatenate([root1] + [rel1[r] for r in range(R)], axis=0)   # (3H, H)
    qw1p = jnp.pad(qw1, ((0, 0), (0, H - qw1.shape[1])))                   # (H, H)

    w_packed = jnp.concatenate([pw0, pw1, wf0, wf1, qw0, qw1p],
                               axis=0).astype(jnp.bfloat16)
    assert w_packed.shape == (W_ROWS, H)

    v_packed = jnp.concatenate(
        [row(pb0), row(pb1),
         row(mb0), row(ln0w), row(ln0b),
         row(mb1), row(ln1w), row(ln1b),
         row(qb0), row(qb1), row(qw2.T), row(qb2),
         jnp.zeros((V_ROWS - 12, H), jnp.float32)], axis=0)
    assert v_packed.shape == (V_ROWS, H)
    return w_packed, v_packed


def typed_edges_to_dense_adj(edge_index_dict):
    """Glue: dict of per-relation (2, E) edge indices -> (R, N, N) dense adjacency,
    row-normalized so A[r] @ h == per-node mean aggregation (RGCNConv aggr='mean').
    Zero-in-degree nodes receive a zero aggregated message (deg clamped to 1)."""
    adjs = []
    for r in range(R):
        src, dst = edge_index_dict[r]
        a = jnp.zeros((N, N), jnp.float32).at[dst, src].add(1.0)
        deg = jnp.sum(a, axis=-1, keepdims=True)
        adjs.append(a / jnp.maximum(deg, 1.0))
    return jnp.stack(adjs, axis=0)


# ------------------------------- main ---------------------------------------------
if __name__ == "__main__":
    key = jax.random.PRNGKey(0)
    k_x, k_e, k_p = jax.random.split(key, 3)

    # B independent graphs (node features + typed edge_index dict per graph); the
    # x dict in the torch module collapses to its first value.
    x_keys = jax.random.split(k_x, B_GRAPHS)
    x_b = jnp.concatenate(
        [jax.random.normal(x_keys[b], (N, F_IN), jnp.float32) for b in range(B_GRAPHS)],
        axis=0)                                                     # (B*N, F_IN)

    e_keys = jax.random.split(k_e, B_GRAPHS)
    adj_blocks = []
    for b in range(B_GRAPHS):
        rel_keys = jax.random.split(e_keys[b], R)
        edge_index_dict = {
            r: jax.random.randint(rel_keys[r], (2, E_PER_REL), 0, N, dtype=jnp.int32)
            for r in range(R)
        }
        adj_blocks.append(typed_edges_to_dense_adj(edge_index_dict).reshape(R * N, N))
    adj_b = jnp.concatenate(adj_blocks, axis=0).astype(jnp.bfloat16)  # (B*R*N, N)

    params = init_params(k_p)
    w_packed, v_packed = pack_params(params)

    out = relational_gene_network(x_b, adj_b, w_packed, v_packed)
    jax.block_until_ready(out)
    assert out.shape == (B_GRAPHS, N, 1) and out.dtype == jnp.float32
    print("KERNEL_OK")
</pallas_src>

<mosaic_0001>
module attributes {stable_mosaic.version = 11 : i64} {
  func.func @gene_net_kernel(%arg0: i32, %arg1: memref<64x16xf32, #tpu.memory_space<vmem>>, %arg2: memref<128x64xbf16, #tpu.memory_space<vmem>>, %arg3: memref<304x32xbf16, #tpu.memory_space<vmem>>, %arg4: memref<16x32xf32, #tpu.memory_space<vmem>>, %arg5: memref<64x128xf32, #tpu.memory_space<vmem>>) attributes {dimension_semantics = [#tpu.dimension_semantics<parallel>], iteration_bounds = array<i64: 8>, scalar_prefetch = 0 : i64, scratch_operands = 0 : i64, tpu.core_type = #tpu.core_type<tc>, window_params = [{transform_indices = @transform_0, window_bounds = array<i64: 64, 16>}, {transform_indices = @transform_1, window_bounds = array<i64: 128, 64>}, {pipeline_mode = #tpu.pipeline_mode<synchronous>, transform_indices = @transform_2, window_bounds = array<i64: 304, 32>}, {pipeline_mode = #tpu.pipeline_mode<synchronous>, transform_indices = @transform_3, window_bounds = array<i64: 16, 32>}, {transform_indices = @transform_4, window_bounds = array<i64: 64, 128>}]} {
    %c0 = arith.constant 0 : index
    %c0_0 = arith.constant 0 : index
    %0 = vector.load %arg1[%c0, %c0_0] : memref<64x16xf32, #tpu.memory_space<vmem>>, vector<64x16xf32>
    %c0_1 = arith.constant 0 : index
    %c0_2 = arith.constant 0 : index
    %1 = vector.load %arg2[%c0_1, %c0_2] : memref<128x64xbf16, #tpu.memory_space<vmem>>, vector<128x64xbf16>
    %c0_3 = arith.constant 0 : index
    %c0_4 = arith.constant 0 : index
    %2 = vector.load %arg4[%c0_3, %c0_4] : memref<16x32xf32, #tpu.memory_space<vmem>>, vector<16x32xf32>
    %3 = arith.truncf %0 : vector<64x16xf32> to vector<64x16xbf16>
    %c0_5 = arith.constant 0 : index
    %c0_6 = arith.constant 0 : index
    %4 = vector.load %arg3[%c0_5, %c0_6] : memref<304x32xbf16, #tpu.memory_space<vmem>>, vector<16x32xbf16>
    %cst = arith.constant dense<0.000000e+00> : vector<64x32xf32>
    %5 = tpu.matmul %3, %4, %cst {dimension_numbers = #tpu.dot_dimension_numbers<[1], [0], [0], [1], [0, 0, 1, 1], [], []>} : vector<64x16xbf16>, vector<16x32xbf16>, vector<64x32xf32> -> vector<64x32xf32>
    %6 = vector.extract_strided_slice %2 {offsets = [0, 0], sizes = [1, 32], strides = [1, 1]} : vector<16x32xf32> to vector<1x32xf32>
    %7 = vector.broadcast %6 : vector<1x32xf32> to vector<64x32xf32>
    %8 = arith.addf %5, %7 : vector<64x32xf32>
    %cst_7 = arith.constant 0.000000e+00 : f32
    %9 = vector.broadcast %cst_7 : f32 to vector<64x32xf32>
    %10 = arith.maximumf %8, %9 : vector<64x32xf32>
    %11 = arith.truncf %10 : vector<64x32xf32> to vector<64x32xbf16>
    %c16 = arith.constant 16 : index
    %c0_8 = arith.constant 0 : index
    %12 = vector.load %arg3[%c16, %c0_8] : memref<304x32xbf16, #tpu.memory_space<vmem>>, vector<32x32xbf16>
    %cst_9 = arith.constant dense<0.000000e+00> : vector<64x32xf32>
    %13 = tpu.matmul %11, %12, %cst_9 {dimension_numbers = #tpu.dot_dimension_numbers<[1], [0], [0], [1], [0, 0, 1, 1], [], []>} : vector<64x32xbf16>, vector<32x32xbf16>, vector<64x32xf32> -> vector<64x32xf32>
    %14 = vector.extract_strided_slice %2 {offsets = [1, 0], sizes = [1, 32], strides = [1, 1]} : vector<16x32xf32> to vector<1x32xf32>
    %15 = vector.broadcast %14 : vector<1x32xf32> to vector<64x32xf32>
    %16 = arith.addf %13, %15 : vector<64x32xf32>
    %cst_10 = arith.constant 0.000000e+00 : f32
    %17 = vector.broadcast %cst_10 : f32 to vector<64x32xf32>
    %18 = arith.maximumf %16, %17 : vector<64x32xf32>
    %19 = vector.extract_strided_slice %2 {offsets = [2, 0], sizes = [1, 32], strides = [1, 1]} : vector<16x32xf32> to vector<1x32xf32>
    %20 = vector.extract_strided_slice %2 {offsets = [3, 0], sizes = [1, 32], strides = [1, 1]} : vector<16x32xf32> to vector<1x32xf32>
    %21 = vector.extract_strided_slice %2 {offsets = [4, 0], sizes = [1, 32], strides = [1, 1]} : vector<16x32xf32> to vector<1x32xf32>
    %22 = arith.truncf %18 : vector<64x32xf32> to vector<64x32xbf16>
    %cst_11 = arith.constant dense<0.000000e+00> : vector<128x32xf32>
    %23 = tpu.matmul %1, %22, %cst_11 {dimension_numbers = #tpu.dot_dimension_numbers<[1], [0], [0], [1], [0, 0, 1, 1], [], []>} : vector<128x64xbf16>, vector<64x32xbf16>, vector<128x32xf32> -> vector<128x32xf32>
    %24 = vector.extract_strided_slice %23 {offsets = [0, 0], sizes = [64, 32], strides = [1, 1]} : vector<128x32xf32> to vector<64x32xf32>
    %25 = vector.extract_strided_slice %23 {offsets = [64, 0], sizes = [64, 32], strides = [1, 1]} : vector<128x32xf32> to vector<64x32xf32>
    %26 = tpu.concatenate %18, %24, %25 in 1 : vector<64x32xf32>, vector<64x32xf32>, vector<64x32xf32> -> vector<64x96xf32>
    %27 = arith.truncf %26 : vector<64x96xf32> to vector<64x96xbf16>
    %c48 = arith.constant 48 : index
    %c0_12 = arith.constant 0 : index
    %28 = vector.load %arg3[%c48, %c0_12] : memref<304x32xbf16, #tpu.memory_space<vmem>>, vector<96x32xbf16>
    %cst_13 = arith.constant dense<0.000000e+00> : vector<64x32xf32>
    %29 = tpu.matmul %27, %28, %cst_13 {dimension_numbers = #tpu.dot_dimension_numbers<[1], [0], [0], [1], [0, 0, 1, 1], [], []>} : vector<64x96xbf16>, vector<96x32xbf16>, vector<64x32xf32> -> vector<64x32xf32>
    %30 = vector.broadcast %19 : vector<1x32xf32> to vector<64x32xf32>
    %31 = arith.addf %29, %30 : vector<64x32xf32>
    %cst_14 = arith.constant 0.000000e+00 : f32
    %32 = vector.broadcast %cst_14 : f32 to vector<64x32xf32>
    %33 = arith.maximumf %31, %32 : vector<64x32xf32>
    %34 = vector.shape_cast %33 : vector<64x32xf32> to vector<1x64x32xf32>
    %cst_15 = arith.constant dense<0.000000e+00> : vector<1xf32>
    %35 = vector.multi_reduction <add>, %34, %cst_15 [1, 2] : vector<1x64x32xf32> to vector<1xf32>
    %36 = vector.shape_cast %35 : vector<1xf32> to vector<1x1x1xf32>
    %37 = vector.extract %36[0, 0, 0] : f32 from vector<1x1x1xf32>
    %38 = arith.mulf %33, %33 : vector<64x32xf32>
    %39 = vector.shape_cast %38 : vector<64x32xf32> to vector<1x64x32xf32>
    %cst_16 = arith.constant dense<0.000000e+00> : vector<1xf32>
    %40 = vector.multi_reduction <add>, %39, %cst_16 [1, 2] : vector<1x64x32xf32> to vector<1xf32>
    %41 = vector.shape_cast %40 : vector<1xf32> to vector<1x1x1xf32>
    %42 = vector.extract %41[0, 0, 0] : f32 from vector<1x1x1xf32>
    %cst_17 = arith.constant 4.8828125E-4 : f32
    %43 = arith.mulf %37, %cst_17 : f32
    %cst_18 = arith.constant 4.8828125E-4 : f32
    %44 = arith.mulf %42, %cst_18 : f32
    %45 = arith.mulf %43, %43 : f32
    %46 = arith.subf %44, %45 : f32
    %cst_19 = arith.constant 0.000000e+00 : f32
    %47 = arith.maximumf %46, %cst_19 : f32
    %48 = math.sqrt %47 : f32
    %cst_20 = arith.constant 9.99999974E-6 : f32
    %49 = arith.addf %48, %cst_20 : f32
    %50 = vector.broadcast %49 : f32 to vector<1x32xf32>
    %51 = tpu.reciprocal %50 {approx = true} : vector<1x32xf32> -> vector<1x32xf32>
    %52 = arith.mulf %20, %51 : vector<1x32xf32>
    %53 = vector.broadcast %43 : f32 to vector<64x32xf32>
    %54 = arith.subf %33, %53 : vector<64x32xf32>
    %55 = vector.broadcast %52 : vector<1x32xf32> to vector<64x32xf32>
    %56 = arith.mulf %54, %55 : vector<64x32xf32>
    %57 = vector.broadcast %21 : vector<1x32xf32> to vector<64x32xf32>
    %58 = arith.addf %56, %57 : vector<64x32xf32>
    %59 = vector.extract_strided_slice %2 {offsets = [5, 0], sizes = [1, 32], strides = [1, 1]} : vector<16x32xf32> to vector<1x32xf32>
    %60 = vector.extract_strided_slice %2 {offsets = [6, 0], sizes = [1, 32], strides = [1, 1]} : vector<16x32xf32> to vector<1x32xf32>
    %61 = vector.extract_strided_slice %2 {offsets = [7, 0], sizes = [1, 32], strides = [1, 1]} : vector<16x32xf32> to vector<1x32xf32>
    %62 = arith.truncf %58 : vector<64x32xf32> to vector<64x32xbf16>
    %cst_21 = arith.constant dense<0.000000e+00> : vector<128x32xf32>
    %63 = tpu.matmul %1, %62, %cst_21 {dimension_numbers = #tpu.dot_dimension_numbers<[1], [0], [0], [1], [0, 0, 1, 1], [], []>} : vector<128x64xbf16>, vector<64x32xbf16>, vector<128x32xf32> -> vector<128x32xf32>
    %64 = vector.extract_strided_slice %63 {offsets = [0, 0], sizes = [64, 32], strides = [1, 1]} : vector<128x32xf32> to vector<64x32xf32>
    %65 = vector.extract_strided_slice %63 {offsets = [64, 0], sizes = [64, 32], strides = [1, 1]} : vector<128x32xf32> to vector<64x32xf32>
    %66 = tpu.concatenate %58, %64, %65 in 1 : vector<64x32xf32>, vector<64x32xf32>, vector<64x32xf32> -> vector<64x96xf32>
    %67 = arith.truncf %66 : vector<64x96xf32> to vector<64x96xbf16>
    %c144 = arith.constant 144 : index
    %c0_22 = arith.constant 0 : index
    %68 = vector.load %arg3[%c144, %c0_22] : memref<304x32xbf16, #tpu.memory_space<vmem>>, vector<96x32xbf16>
    %cst_23 = arith.constant dense<0.000000e+00> : vector<64x32xf32>
    %69 = tpu.matmul %67, %68, %cst_23 {dimension_numbers = #tpu.dot_dimension_numbers<[1], [0], [0], [1], [0, 0, 1, 1], [], []>} : vector<64x96xbf16>, vector<96x32xbf16>, vector<64x32xf32> -> vector<64x32xf32>
    %70 = vector.broadcast %59 : vector<1x32xf32> to vector<64x32xf32>
    %71 = arith.addf %69, %70 : vector<64x32xf32>
    %cst_24 = arith.constant 0.000000e+00 : f32
    %72 = vector.broadcast %cst_24 : f32 to vector<64x32xf32>
    %73 = arith.maximumf %71, %72 : vector<64x32xf32>
    %74 = vector.shape_cast %73 : vector<64x32xf32> to vector<1x64x32xf32>
    %cst_25 = arith.constant dense<0.000000e+00> : vector<1xf32>
    %75 = vector.multi_reduction <add>, %74, %cst_25 [1, 2] : vector<1x64x32xf32> to vector<1xf32>
    %76 = vector.shape_cast %75 : vector<1xf32> to vector<1x1x1xf32>
    %77 = vector.extract %76[0, 0, 0] : f32 from vector<1x1x1xf32>
    %78 = arith.mulf %73, %73 : vector<64x32xf32>
    %79 = vector.shape_cast %78 : vector<64x32xf32> to vector<1x64x32xf32>
    %cst_26 = arith.constant dense<0.000000e+00> : vector<1xf32>
    %80 = vector.multi_reduction <add>, %79, %cst_26 [1, 2] : vector<1x64x32xf32> to vector<1xf32>
    %81 = vector.shape_cast %80 : vector<1xf32> to vector<1x1x1xf32>
    %82 = vector.extract %81[0, 0, 0] : f32 from vector<1x1x1xf32>
    %cst_27 = arith.constant 4.8828125E-4 : f32
    %83 = arith.mulf %77, %cst_27 : f32
    %cst_28 = arith.constant 4.8828125E-4 : f32
    %84 = arith.mulf %82, %cst_28 : f32
    %85 = arith.mulf %83, %83 : f32
    %86 = arith.subf %84, %85 : f32
    %cst_29 = arith.constant 0.000000e+00 : f32
    %87 = arith.maximumf %86, %cst_29 : f32
    %88 = math.sqrt %87 : f32
    %cst_30 = arith.constant 9.99999974E-6 : f32
    %89 = arith.addf %88, %cst_30 : f32
    %90 = vector.broadcast %89 : f32 to vector<1x32xf32>
    %91 = tpu.reciprocal %90 {approx = true} : vector<1x32xf32> -> vector<1x32xf32>
    %92 = arith.mulf %60, %91 : vector<1x32xf32>
    %93 = vector.broadcast %83 : f32 to vector<64x32xf32>
    %94 = arith.subf %73, %93 : vector<64x32xf32>
    %95 = vector.broadcast %92 : vector<1x32xf32> to vector<64x32xf32>
    %96 = arith.mulf %94, %95 : vector<64x32xf32>
    %97 = vector.broadcast %61 : vector<1x32xf32> to vector<64x32xf32>
    %98 = arith.addf %96, %97 : vector<64x32xf32>
    %99 = arith.truncf %98 : vector<64x32xf32> to vector<64x32xbf16>
    %c240 = arith.constant 240 : index
    %c0_31 = arith.constant 0 : index
    %100 = vector.load %arg3[%c240, %c0_31] : memref<304x32xbf16, #tpu.memory_space<vmem>>, vector<32x32xbf16>
    %cst_32 = arith.constant dense<0.000000e+00> : vector<64x32xf32>
    %101 = tpu.matmul %99, %100, %cst_32 {dimension_numbers = #tpu.dot_dimension_numbers<[1], [0], [0], [1], [0, 0, 1, 1], [], []>} : vector<64x32xbf16>, vector<32x32xbf16>, vector<64x32xf32> -> vector<64x32xf32>
    %102 = vector.extract_strided_slice %2 {offsets = [8, 0], sizes = [1, 32], strides = [1, 1]} : vector<16x32xf32> to vector<1x32xf32>
    %103 = vector.broadcast %102 : vector<1x32xf32> to vector<64x32xf32>
    %104 = arith.addf %101, %103 : vector<64x32xf32>
    %cst_33 = arith.constant 0.000000e+00 : f32
    %105 = vector.broadcast %cst_33 : f32 to vector<64x32xf32>
    %106 = arith.maximumf %104, %105 : vector<64x32xf32>
    %107 = arith.truncf %106 : vector<64x32xf32> to vector<64x32xbf16>
    %c272 = arith.constant 272 : index
    %c0_34 = arith.constant 0 : index
    %108 = vector.load %arg3[%c272, %c0_34] : memref<304x32xbf16, #tpu.memory_space<vmem>>, vector<32x32xbf16>
    %cst_35 = arith.constant dense<0.000000e+00> : vector<64x32xf32>
    %109 = tpu.matmul %107, %108, %cst_35 {dimension_numbers = #tpu.dot_dimension_numbers<[1], [0], [0], [1], [0, 0, 1, 1], [], []>} : vector<64x32xbf16>, vector<32x32xbf16>, vector<64x32xf32> -> vector<64x32xf32>
    %110 = vector.extract_strided_slice %2 {offsets = [9, 0], sizes = [1, 32], strides = [1, 1]} : vector<16x32xf32> to vector<1x32xf32>
    %111 = vector.broadcast %110 : vector<1x32xf32> to vector<64x32xf32>
    %112 = arith.addf %109, %111 : vector<64x32xf32>
    %cst_36 = arith.constant 0.000000e+00 : f32
    %113 = vector.broadcast %cst_36 : f32 to vector<64x32xf32>
    %114 = arith.maximumf %112, %113 : vector<64x32xf32>
    %115 = vector.extract_strided_slice %2 {offsets = [10, 0], sizes = [1, 32], strides = [1, 1]} : vector<16x32xf32> to vector<1x32xf32>
    %116 = vector.broadcast %115 : vector<1x32xf32> to vector<64x32xf32>
    %117 = arith.mulf %114, %116 : vector<64x32xf32>
    %cst_37 = arith.constant dense<0.000000e+00> : vector<64xf32>
    %118 = vector.multi_reduction <add>, %117, %cst_37 [1] : vector<64x32xf32> to vector<64xf32>
    %119 = vector.shape_cast %118 : vector<64xf32> to vector<64x1xf32>
    %120 = vector.extract_strided_slice %2 {offsets = [11, 0], sizes = [1, 1], strides = [1, 1]} : vector<16x32xf32> to vector<1x1xf32>
    %121 = vector.broadcast %120 : vector<1x1xf32> to vector<64x1xf32>
    %122 = arith.addf %119, %121 : vector<64x1xf32>
    %123 = vector.shape_cast %122 : vector<64x1xf32> to vector<64x1xf32>
    %124 = vector.broadcast %123 : vector<64x1xf32> to vector<64x128xf32>
    %c0_38 = arith.constant 0 : index
    %c0_39 = arith.constant 0 : index
    %125 = vector.load %arg5[%c0_38, %c0_39] : memref<64x128xf32, #tpu.memory_space<vmem>>, vector<64x128xf32>
    tpu.vector_store %arg5[%c0_38, %c0_39], %124 {strides = array<i32>} : memref<64x128xf32, #tpu.memory_space<vmem>>, vector<64x128xf32>,
    return
  }
  func.func @transform_0(%arg0: i32) -> (i32, i32) {
    %c0_i32 = arith.constant 0 : i32
    %c0_i32_0 = arith.constant 0 : i32
    return %arg0, %c0_i32 : i32, i32
  }
  func.func @transform_1(%arg0: i32) -> (i32, i32) {
    %c0_i32 = arith.constant 0 : i32
    %c0_i32_0 = arith.constant 0 : i32
    return %arg0, %c0_i32 : i32, i32
  }
  func.func @transform_2(%arg0: i32) -> (i32, i32) {
    %c0_i32 = arith.constant 0 : i32
    %c0_i32_0 = arith.constant 0 : i32
    %c0_i32_1 = arith.constant 0 : i32
    return %c0_i32, %c0_i32_0 : i32, i32
  }
  func.func @transform_3(%arg0: i32) -> (i32, i32) {
    %c0_i32 = arith.constant 0 : i32
    %c0_i32_0 = arith.constant 0 : i32
    %c0_i32_1 = arith.constant 0 : i32
    return %c0_i32, %c0_i32_0 : i32, i32
  }
  func.func @transform_4(%arg0: i32) -> (i32, i32) {
    %c0_i32 = arith.constant 0 : i32
    %c0_i32_0 = arith.constant 0 : i32
    return %arg0, %c0_i32 : i32, i32
  }
}

</mosaic_0001>

<llo_original>
// kernel: relational_gene_network.1
$region0: #{relational_gene_network.1}
  #allocation0 [shape = 'u32[]', space=smem, size = 0x4, offset = 0x4, fixed_abs, tag = 'smem constant byte address 0x4 - core index']
  #allocation1 [shape = 'u32[144,128]{1,0:T(1,128)}', space=vmem, size = 0x12000, scoped, tag = 'internal scratch']
  %s0 = inlined_call_operand.vmem [shape: f32[512,16], index: 0, kind: input, shape index: {}]
  %s1 = inlined_call_operand.vmem [shape: bf16[1024,64], index: 1, kind: input, shape index: {}]
  %s2 = inlined_call_operand.vmem [shape: bf16[304,32], index: 2, kind: input, shape index: {}]
  %s3 = inlined_call_operand.vmem [shape: f32[16,32], index: 3, kind: input, shape index: {}]
  %s4 = inlined_call_operand.vmem [shape: f32[512,128], index: 4, kind: output, shape index: {}]
  %s5 = sld [smem:[#allocation0]]
  $region49: #{relational_gene_network.1} parent=0
    _
  %s7 = ssub.s32 1, %s5
  %s8 = scalar_select 0, %s7, %s5
  loop: start=0, step=1, limit=10
  $region2: #{relational_gene_network.1} parent=0 // loop_pre_header
    _
  $region3: #{relational_gene_network.1} parent=0 // loop_header
    %s10 = sphi 0, %s14
    %p11 = scmp.ge.s32.totalorder %s10, 10
    %s20 = sphi 0, %s22
    %s23 = sphi 0, %s20
    %s24 = sphi 0, %s23
    %s40 = sphi 0, %s24
    %s46 = sphi 0, %s48
    %s49 = sphi 0, %s46
    %s50 = sphi 0, %s49
    %s66 = sphi 0, %s50
    %s70 = sphi 0, %s70
    %s72 = sphi 0, %s70
    %s73 = sphi 0, %s72
    %s87 = sphi 0, %s73
    %s91 = sphi 0, %s91
    %s93 = sphi 0, %s91
    %s94 = sphi 0, %s93
    %s108 = sphi 0, %s94
    %s114 = sphi 0, %s116
    %s117 = sphi 0, %s114
    %s118 = sphi 0, %s117
    %s134 = sphi 0, %s118
  $region4: #{relational_gene_network.1} parent=0 // loop_header_branch
    %13 = sbr.rel (%p11) target = $region8
  $region5: #{relational_gene_network.1} parent=0 // loop_body
    %s15 = ssub.s32 %s10, 1
    %s16 = ssub.s32 %s10, 2
    %s17 = sadd.s32 %s10, 1
    %s18 = ssub.s32 %s10, %s17
    %p19 = scmp.eq.s32.totalorder %s18, 0
    %s21 = sadd.s32 %s20, 1
    %s22 = scalar_select %p19, %s20, %s21
    %p25 = pneg %p19
    %p26 = scmp.eq.s32.totalorder %s10, 7
    %p27 = por %p25, %p26
    %p28 = scmp.ne.s32.totalorder %s20, %s23
    %p29 = scmp.eq.s32.totalorder %s10, 0
    %p30 = por %p28, %p29
    %p31 = scmp.ne.s32.totalorder %s20, %s23
    %p32 = scmp.eq.s32.totalorder %s15, 7
    %p33 = por %p31, %p32
    %p34 = scmp.ne.s32.totalorder %s23, %s24
    %p35 = scmp.eq.s32.totalorder %s15, 0
    %p36 = por %p34, %p35
    %p37 = scmp.ne.s32.totalorder %s23, %s24
    %p38 = scmp.eq.s32.totalorder %s16, 7
    %p39 = por %p37, %p38
    %p41 = scmp.ne.s32.totalorder %s24, %s40
    %p42 = scmp.eq.s32.totalorder %s16, 0
    %p43 = por %p41, %p42
    %s44 = ssub.s32 %s10, %s17
    %p45 = scmp.eq.s32.totalorder %s44, 0
    %s47 = sadd.s32 %s46, 1
    %s48 = scalar_select %p45, %s46, %s47
    %p51 = pneg %p45
    %p52 = scmp.eq.s32.totalorder %s10, 7
    %p53 = por %p51, %p52
    %p54 = scmp.ne.s32.totalorder %s46, %s49
    %p55 = scmp.eq.s32.totalorder %s10, 0
    %p56 = por %p54, %p55
    %p57 = scmp.ne.s32.totalorder %s46, %s49
    %p58 = scmp.eq.s32.totalorder %s15, 7
    %p59 = por %p57, %p58
    %p60 = scmp.ne.s32.totalorder %s49, %s50
    %p61 = scmp.eq.s32.totalorder %s15, 0
    %p62 = por %p60, %p61
    %p63 = scmp.ne.s32.totalorder %s49, %s50
    %p64 = scmp.eq.s32.totalorder %s16, 7
    %p65 = por %p63, %p64
    %p67 = scmp.ne.s32.totalorder %s50, %s66
    %p68 = scmp.eq.s32.totalorder %s16, 0
    %p69 = por %p67, %p68
    %s71 = sadd.s32 %s70, 1
    %p74 = scmp.eq.s32.totalorder %s10, 7
    %p75 = scmp.ne.s32.totalorder %s70, %s72
    %p76 = scmp.eq.s32.totalorder %s10, 0
    %p77 = por %p75, %p76
    %p78 = scmp.ne.s32.totalorder %s70, %s72
    %p79 = scmp.eq.s32.totalorder %s15, 7
    %p80 = por %p78, %p79
    %p81 = scmp.ne.s32.totalorder %s72, %s73
    %p82 = scmp.eq.s32.totalorder %s15, 0
    %p83 = por %p81, %p82
    %p84 = scmp.ne.s32.totalorder %s72, %s73
    %p85 = scmp.eq.s32.totalorder %s16, 7
    %p86 = por %p84, %p85
    %p88 = scmp.ne.s32.totalorder %s73, %s87
    %p89 = scmp.eq.s32.totalorder %s16, 0
    %p90 = por %p88, %p89
    %s92 = sadd.s32 %s91, 1
    %p95 = scmp.eq.s32.totalorder %s10, 7
    %p96 = scmp.ne.s32.totalorder %s91, %s93
    %p97 = scmp.eq.s32.totalorder %s10, 0
    %p98 = por %p96, %p97
    %p99 = scmp.ne.s32.totalorder %s91, %s93
    %p100 = scmp.eq.s32.totalorder %s15, 7
    %p101 = por %p99, %p100
    %p102 = scmp.ne.s32.totalorder %s93, %s94
    %p103 = scmp.eq.s32.totalorder %s15, 0
    %p104 = por %p102, %p103
    %p105 = scmp.ne.s32.totalorder %s93, %s94
    %p106 = scmp.eq.s32.totalorder %s16, 7
    %p107 = por %p105, %p106
    %p109 = scmp.ne.s32.totalorder %s94, %s108
    %p110 = scmp.eq.s32.totalorder %s16, 0
    %p111 = por %p109, %p110
    %s112 = ssub.s32 %s10, %s17
    %p113 = scmp.eq.s32.totalorder %s112, 0
    %s115 = sadd.s32 %s114, 1
    %s116 = scalar_select %p113, %s114, %s115
    %p119 = pneg %p113
    %p120 = scmp.eq.s32.totalorder %s10, 7
    %p121 = por %p119, %p120
    %p122 = scmp.ne.s32.totalorder %s114, %s117
    %p123 = scmp.eq.s32.totalorder %s10, 0
    %p124 = por %p122, %p123
    %p125 = scmp.ne.s32.totalorder %s114, %s117
    %p126 = scmp.eq.s32.totalorder %s15, 7
    %p127 = por %p125, %p126
    %p128 = scmp.ne.s32.totalorder %s117, %s118
    %p129 = scmp.eq.s32.totalorder %s15, 0
    %p130 = por %p128, %p129
    %p131 = scmp.ne.s32.totalorder %s117, %s118
    %p132 = scmp.eq.s32.totalorder %s16, 7
    %p133 = por %p131, %p132
    %p135 = scmp.ne.s32.totalorder %s118, %s134
    %p136 = scmp.eq.s32.totalorder %s16, 0
    %p137 = por %p135, %p136
    %p138 = scmp.le.s32.totalorder 1, %s10
    %p139 = scmp.lt.s32.totalorder %s10, 9
    %p140 = pnand %p138, %p139
    %p141 = pneg %p140
    // Predicated region
    $region9: #{relational_gene_network.1} parent=5 // pred_check
      _
    $region10: #{relational_gene_network.1} parent=5 // pred_check_branch
      %143 = sbr.rel (%p140) target = $region12
    $region11: #{relational_gene_network.1} parent=5 // pred_region
      %s144 = ssub.s32 %s10, 1
      // Predicated region
      $region13: #{relational_gene_network.1} parent=11 // pred_check
        %p145 = pneg %p83
      $region14: #{relational_gene_network.1} parent=11 // pred_check_branch
        %147 = sbr.rel (%p145) target = $region16
      $region15: #{relational_gene_network.1} parent=11 // pred_region
        _
      $region16: #{relational_gene_network.1} parent=11 // pred_fallthru
        _
      // Predicated region
      $region17: #{relational_gene_network.1} parent=11 // pred_check
        %p148 = pneg %p104
      $region18: #{relational_gene_network.1} parent=11 // pred_check_branch
        %150 = sbr.rel (%p148) target = $region20
      $region19: #{relational_gene_network.1} parent=11 // pred_region
        _
      $region20: #{relational_gene_network.1} parent=11 // pred_fallthru
        _
    $region12: #{relational_gene_network.1} parent=5 // pred_fallthru
      _
    %p151 = scmp.lt.s32.totalorder %s10, 8
    // Predicated region
    $region21: #{relational_gene_network.1} parent=5 // pred_check
      %p152 = pneg %p151
    $region22: #{relational_gene_network.1} parent=5 // pred_check_branch
      %154 = sbr.rel (%p152) target = $region24
    $region23: #{relational_gene_network.1} parent=5 // pred_region
      // Predicated region
      $region25: #{relational_gene_network.1} parent=23 // pred_check
        %p155 = pneg %p30
      $region26: #{relational_gene_network.1} parent=23 // pred_check_branch
        %157 = sbr.rel (%p155) target = $region28
      $region27: #{relational_gene_network.1} parent=23 // pred_region
        %s158 = smul.u32 8, %s10
        %p159 = scmp.lt.s32.totalorder %s158, 63
        %s160 = scalar_select %p159, %s158, 63
        %s161 = smul.addr %s160, 8
        %s162 = scalar_lea.vmem %s0, %s161
        %s163 = smul.u32 8, %s10
      $region28: #{relational_gene_network.1} parent=23 // pred_fallthru
        _
      // Predicated region
      $region29: #{relational_gene_network.1} parent=23 // pred_check
        %p164 = pneg %p56
      $region30: #{relational_gene_network.1} parent=23 // pred_check_branch
        %166 = sbr.rel (%p164) target = $region32
      $region31: #{relational_gene_network.1} parent=23 // pred_region
        %s167 = smul.u32 16, %s10
        %p168 = scmp.lt.s32.totalorder %s167, 127
        %s169 = scalar_select %p168, %s167, 127
        %s170 = smul.addr %s169, 4
        %s171 = scalar_lea.vmem %s1, %s170
        %s172 = smul.u32 16, %s10
      $region32: #{relational_gene_network.1} parent=23 // pred_fallthru
        _
    $region24: #{relational_gene_network.1} parent=5 // pred_fallthru
      _
    %p173 = scmp.le.s32.totalorder 1, %s10
    %p174 = scmp.lt.s32.totalorder %s10, 9
    %p175 = pnand %p173, %p174
    %p176 = pneg %p175
    // Predicated region
    $region33: #{relational_gene_network.1} parent=5 // pred_check
      _
    $region34: #{relational_gene_network.1} parent=5 // pred_check_branch
      %178 = sbr.rel (%p175) target = $region36
    $region35: #{relational_gene_network.1} parent=5 // pred_region
      %s179 = ssub.s32 %s10, 1
      %s180 = smul.u32 8, %s15
      %p181 = scmp.lt.s32.totalorder %s180, 63
      %s182 = scalar_select %p181, %s180, 63
      %s183 = smul.addr %s182, 8
      %s184 = scalar_lea.vmem %s0, %s183
      %p185 = pneg %p36
      %p186 = pneg %p33
      %s187 = smul.u32 16, %s15
      %p188 = scmp.lt.s32.totalorder %s187, 127
      %s189 = scalar_select %p188, %s187, 127
      %s190 = smul.addr %s189, 4
      %s191 = scalar_lea.vmem %s1, %s190
      %p192 = pneg %p62
      %p193 = pneg %p59
      %p194 = pneg %p83
      %p195 = pneg %p80
      %p196 = pneg %p104
      %p197 = pneg %p101
      %p198 = pneg %p130
      %p199 = pneg %p127
      %s200 = smul.u32 8, %s15
      %p201 = scmp.lt.s32.totalorder %s200, 63
      %s202 = scalar_select %p201, %s200, 63
      %s203 = smul.addr %s202, 8
      %s204 = scalar_lea.vmem %s4, %s203
      %s205 = smul.u32 8, %s15
      %p206 = scmp.lt.s32.totalorder %s205, 63
      %s207 = scalar_select %p206, %s205, 63
      %s208 = smul.addr %s207, 8
      %s209 = scalar_lea.vmem %s0, %s208
      %s210 = smul.u32 8, %s15
      %s211 = smul.u32 16, %s15
      %p212 = scmp.lt.s32.totalorder %s211, 127
      %s213 = scalar_select %p212, %s211, 127
      %s214 = smul.addr %s213, 4
      %s215 = scalar_lea.vmem %s1, %s214
      %s216 = smul.u32 16, %s15
      %s217 = smul.u32 8, %s15
      %p218 = scmp.lt.s32.totalorder %s217, 63
      %s219 = scalar_select %p218, %s217, 63
      %s220 = smul.addr %s219, 8
      %s221 = scalar_lea.vmem %s4, %s220
      %s222 = smul.u32 8, %s15
      %v224 = vld [vmem:[%s209] sm:$0xff]
      %v225 = vld [vmem:[%s209 + $0x8] sm:$0xff]
      %v226 = vld [vmem:[%s209 + $0x10] sm:$0xff]
      %v227 = vld [vmem:[%s209 + $0x18] sm:$0xff]
      %v228 = vld [vmem:[%s209 + $0x20] sm:$0xff]
      %v229 = vld [vmem:[%s209 + $0x28] sm:$0xff]
      %v230 = vld [vmem:[%s209 + $0x30] sm:$0xff]
      %v231 = vld [vmem:[%s209 + $0x38] sm:$0xff]
      %v232 = vld [vmem:[%s215] sm:$0xf]
      %v233 = vld [vmem:[%s215 + $0x4] sm:$0xf]
      %v234 = vld [vmem:[%s215 + $0x8] sm:$0xf]
      %v235 = vld [vmem:[%s215 + $0xc] sm:$0xf]
      %v236 = vld [vmem:[%s215 + $0x10] sm:$0xf]
      %v237 = vld [vmem:[%s215 + $0x14] sm:$0xf]
      %v238 = vld [vmem:[%s215 + $0x18] sm:$0xf]
      %v239 = vld [vmem:[%s215 + $0x1c] sm:$0xf]
      %v240 = vld [vmem:[%s215 + $0x20] sm:$0xf]
      %v241 = vld [vmem:[%s215 + $0x24] sm:$0xf]
      %v242 = vld [vmem:[%s215 + $0x28] sm:$0xf]
      %v243 = vld [vmem:[%s215 + $0x2c] sm:$0xf]
      %v244 = vld [vmem:[%s215 + $0x30] sm:$0xf]
      %v245 = vld [vmem:[%s215 + $0x34] sm:$0xf]
      %v246 = vld [vmem:[%s215 + $0x38] sm:$0xf]
      %v247 = vld [vmem:[%s215 + $0x3c] sm:$0xf]
      %v248 = vld [vmem:[%s3] sm:$0xff]
      %v249 = vld [vmem:[%s3 + $0x8] sm:$0xff]
      %v250 = vpack.c.bf16 %v225, %v224
      %v251 = vpack.c.bf16 %v227, %v226
      %v252 = vpack.c.bf16 %v229, %v228
      %v253 = vpack.c.bf16 %v231, %v230
      %v254 = vld [vmem:[%s2] sm:$0xf]
      %v255 = vld [vmem:[%s2 + $0x4] sm:$0xf]
      %v256 = vlaneseq
      %v257 = vshrl.u32 %v256, 7
      %v258 = vsub.s32 0, %v257
      %v259 = vrot.slane %v248, %v258
      %v262 = vunpack.c.l.b16 %v254
      %v263 = vunpack.c.l.b16 %v255
      %v264 = vpack.c.b16 %v263, %v262
      %vm266 = vcmask 130048
      %v268 = vsel %vm266, %v250, 0
      %v271 = vsel %vm266, %v251, 0
      %v274 = vsel %vm266, %v252, 0
      %v277 = vsel %vm266, %v253, 0
      %279 = vmatprep.subr.bf16.mxu0 0
      %280 = vmatpush1.bf16.msra.mxu0 %v264
      %281 = vmatprep.subr.bf16.mxu0 0
      %282 = vmatpush1.bf16.msra.mxu0 0
      %283 = vmatprep.subr.bf16.mxu0 0
      %284 = vmatpush1.bf16.msra.mxu0 0
      %285 = vmatprep.subr.bf16.mxu0 0
      %286 = vmatpush1.bf16.msra.mxu0 0
      %287 = vmatprep.subr.bf16.mxu0 0
      %288 = vmatpush1.bf16.msra.mxu0 0
      %289 = vmatprep.subr.bf16.mxu0 0
      %290 = vmatpush1.bf16.msra.mxu0 0
      %291 = vmatprep.subr.bf16.mxu0 0
      %292 = vmatpush1.bf16.msra.mxu0 0
      %293 = vmatprep.subr.bf16.mxu0 0
      %294 = vmatpush1.bf16.msra.mxu0 0
      %295 = vmatprep.subr.bf16.mxu0 0
      %296 = vmatpush1.bf16.msra.mxu0 0
      %297 = vmatprep.subr.bf16.mxu0 0
      %298 = vmatpush1.bf16.msra.mxu0 0
      %299 = vmatprep.subr.bf16.mxu0 0
      %300 = vmatpush1.bf16.msra.mxu0 0
      %301 = vmatprep.subr.bf16.mxu0 0
      %302 = vmatpush1.bf16.msra.mxu0 0
      %303 = vmatprep.subr.bf16.mxu0 0
      %304 = vmatpush1.bf16.msra.mxu0 0
      %305 = vmatprep.subr.bf16.mxu0 0
      %306 = vmatpush1.bf16.msra.mxu0 0
      %307 = vmatprep.subr.bf16.mxu0 0
      %308 = vmatpush1.bf16.msra.mxu0 0
      %309 = vmatprep.subr.bf16.mxu0 0
      %310 = vmatpush1.bf16.msra.mxu0 0
      %311 = vmatprep.mubr.bf16.mxu0 0
      %312 = vmatmul.mubr.bf16.gmra.mrb[0].mxu0 %v268
      %v313 = vpop.f32.mrb[0].mxu0
      %v314 = vadd.f32 %v259, %v313
      %v315 = vpop.f32.mrb[0].mxu0
      %v316 = vpop.f32.mrb[0].mxu0
      %v317 = vadd.f32 %v259, %v316
      %v318 = vpop.f32.mrb[0].mxu0
      %319 = vmatprep.mubr.bf16.mxu0 0
      %320 = vmatmul.mubr.bf16.gmra.mrb[0].mxu0 %v271
      %v321 = vpop.f32.mrb[0].mxu0
      %v322 = vadd.f32 %v259, %v321
      %v323 = vpop.f32.mrb[0].mxu0
      %v324 = vpop.f32.mrb[0].mxu0
      %v325 = vadd.f32 %v259, %v324
      %v326 = vpop.f32.mrb[0].mxu0
      %327 = vmatprep.mubr.bf16.mxu0 0
      %328 = vmatmul.mubr.bf16.gmra.mrb[0].mxu0 %v274
      %v329 = vpop.f32.mrb[0].mxu0
      %v330 = vadd.f32 %v259, %v329
      %v331 = vpop.f32.mrb[0].mxu0
      %v332 = vpop.f32.mrb[0].mxu0
      %v333 = vadd.f32 %v259, %v332
      %v334 = vpop.f32.mrb[0].mxu0
      %335 = vmatprep.mubr.bf16.mxu0 0
      %336 = vmatmul.mubr.bf16.gmra.mrb[0].mxu0 %v277
      %v337 = vpop.f32.mrb[0].mxu0
      %v338 = vadd.f32 %v259, %v337
      %v339 = vpop.f32.mrb[0].mxu0
      %v340 = vpop.f32.mrb[0].mxu0
      %v341 = vadd.f32 %v259, %v340
      %v342 = vpop.f32.mrb[0].mxu0
      %343 = vdwg.mxu0
      %v344 = vmax.f32 %v314, 0.0
      %v345 = vmax.f32 %v317, 0.0
      %v346 = vmax.f32 %v322, 0.0
      %v347 = vmax.f32 %v325, 0.0
      %v348 = vmax.f32 %v330, 0.0
      %v349 = vmax.f32 %v333, 0.0
      %v350 = vmax.f32 %v338, 0.0
      %v351 = vmax.f32 %v341, 0.0
      %v352 = vpack.c.bf16 %v345, %v344
      %v353 = vpack.c.bf16 %v347, %v346
      %v354 = vpack.c.bf16 %v349, %v348
      %v355 = vpack.c.bf16 %v351, %v350
      %v356 = vld [vmem:[%s2 + $0x8] sm:$0xf]
      %v357 = vld [vmem:[%s2 + $0xc] sm:$0xf]
      %v358 = vld [vmem:[%s2 + $0x10] sm:$0xf]
      %v359 = vld [vmem:[%s2 + $0x14] sm:$0xf]
      %v360 = vlaneseq
      %v361 = vshrl.u32 %v360, 7
      %v362 = vsub.s32 1, %v361
      %v363 = vrot.slane %v248, %v362
      %v368 = vunpack.c.l.b16 %v356
      %v369 = vunpack.c.l.b16 %v357
      %v370 = vunpack.c.l.b16 %v358
      %v371 = vunpack.c.l.b16 %v359
      %v372 = vpack.c.b16 %v369, %v368
      %v373 = vpack.c.b16 %v371, %v370
      %vm376 = vcmask 261120
      %v378 = vsel %vm376, %v352, 0
      %v381 = vsel %vm376, %v353, 0
      %v384 = vsel %vm376, %v354, 0
      %v387 = vsel %vm376, %v355, 0
      %389 = vmatprep.subr.bf16.mxu0 0
      %390 = vmatpush1.bf16.msra.mxu0 %v372
      %391 = vmatprep.subr.bf16.mxu0 0
      %392 = vmatpush1.bf16.msra.mxu0 %v373
      %393 = vmatprep.subr.bf16.mxu0 0
      %394 = vmatpush1.bf16.msra.mxu0 0
      %395 = vmatprep.subr.bf16.mxu0 0
      %396 = vmatpush1.bf16.msra.mxu0 0
      %397 = vmatprep.subr.bf16.mxu0 0
      %398 = vmatpush1.bf16.msra.mxu0 0
      %399 = vmatprep.subr.bf16.mxu0 0
      %400 = vmatpush1.bf16.msra.mxu0 0
      %401 = vmatprep.subr.bf16.mxu0 0
      %402 = vmatpush1.bf16.msra.mxu0 0
      %403 = vmatprep.subr.bf16.mxu0 0
      %404 = vmatpush1.bf16.msra.mxu0 0
      %405 = vmatprep.subr.bf16.mxu0 0
      %406 = vmatpush1.bf16.msra.mxu0 0
      %407 = vmatprep.subr.bf16.mxu0 0
      %408 = vmatpush1.bf16.msra.mxu0 0
      %409 = vmatprep.subr.bf16.mxu0 0
      %410 = vmatpush1.bf16.msra.mxu0 0
      %411 = vmatprep.subr.bf16.mxu0 0
      %412 = vmatpush1.bf16.msra.mxu0 0
      %413 = vmatprep.subr.bf16.mxu0 0
      %414 = vmatpush1.bf16.msra.mxu0 0
      %415 = vmatprep.subr.bf16.mxu0 0
      %416 = vmatpush1.bf16.msra.mxu0 0
      %417 = vmatprep.subr.bf16.mxu0 0
      %418 = vmatpush1.bf16.msra.mxu0 0
      %419 = vmatprep.subr.bf16.mxu0 0
      %420 = vmatpush1.bf16.msra.mxu0 0
      %421 = vmatprep.mubr.bf16.mxu0 0
      %422 = vmatmul.mubr.bf16.gmra.mrb[0].mxu0 %v378
      %v423 = vpop.f32.mrb[0].mxu0
      %v424 = vadd.f32 %v363, %v423
      %v425 = vpop.f32.mrb[0].mxu0
      %v426 = vpop.f32.mrb[0].mxu0
      %v427 = vadd.f32 %v363, %v426
      %v428 = vpop.f32.mrb[0].mxu0
      %429 = vmatprep.mubr.bf16.mxu0 0
      %430 = vmatmul.mubr.bf16.gmra.mrb[0].mxu0 %v381
      %v431 = vpop.f32.mrb[0].mxu0
      %v432 = vadd.f32 %v363, %v431
      %v433 = vpop.f32.mrb[0].mxu0
      %v434 = vpop.f32.mrb[0].mxu0
      %v435 = vadd.f32 %v363, %v434
      %v436 = vpop.f32.mrb[0].mxu0
      %437 = vmatprep.mubr.bf16.mxu0 0
      %438 = vmatmul.mubr.bf16.gmra.mrb[0].mxu0 %v384
      %v439 = vpop.f32.mrb[0].mxu0
      %v440 = vadd.f32 %v363, %v439
      %v441 = vpop.f32.mrb[0].mxu0
      %v442 = vpop.f32.mrb[0].mxu0
      %v443 = vadd.f32 %v363, %v442
      %v444 = vpop.f32.mrb[0].mxu0
      %445 = vmatprep.mubr.bf16.mxu0 0
      %446 = vmatmul.mubr.bf16.gmra.mrb[0].mxu0 %v387
      %v447 = vpop.f32.mrb[0].mxu0
      %v448 = vadd.f32 %v363, %v447
      %v449 = vpop.f32.mrb[0].mxu0
      %v450 = vpop.f32.mrb[0].mxu0
      %v451 = vadd.f32 %v363, %v450
      %v452 = vpop.f32.mrb[0].mxu0
      %453 = vdwg.mxu0
      %v454 = vmax.f32 %v424, 0.0
      %v455 = vmax.f32 %v427, 0.0
      %v456 = vmax.f32 %v432, 0.0
      %v457 = vmax.f32 %v435, 0.0
      %v458 = vmax.f32 %v440, 0.0
      %v459 = vmax.f32 %v443, 0.0
      %v460 = vmax.f32 %v448, 0.0
      %v461 = vmax.f32 %v451, 0.0
      %v462 = vpack.c.bf16 %v455, %v454
      %v463 = vpack.c.bf16 %v457, %v456
      %v464 = vpack.c.bf16 %v459, %v458
      %v465 = vpack.c.bf16 %v461, %v460
      %v482 = vunpack.c.l.b16 %v232
      %v483 = vunpack.c.l.b16 %v233
      %v484 = vunpack.c.l.b16 %v234
      %v485 = vunpack.c.l.b16 %v235
      %v486 = vunpack.c.l.b16 %v236
      %v487 = vunpack.c.l.b16 %v237
      %v488 = vunpack.c.l.b16 %v238
      %v489 = vunpack.c.l.b16 %v239
      %v490 = vunpack.c.l.b16 %v240
      %v491 = vunpack.c.l.b16 %v241
      %v492 = vunpack.c.l.b16 %v242
      %v493 = vunpack.c.l.b16 %v243
      %v494 = vunpack.c.l.b16 %v244
      %v495 = vunpack.c.l.b16 %v245
      %v496 = vunpack.c.l.b16 %v246
      %v497 = vunpack.c.l.b16 %v247
      %v498 = vpack.c.b16 %v483, %v482
      %v499 = vpack.c.b16 %v485, %v484
      %v500 = vpack.c.b16 %v487, %v486
      %v501 = vpack.c.b16 %v489, %v488
      %v502 = vpack.c.b16 %v491, %v490
      %v503 = vpack.c.b16 %v493, %v492
      %v504 = vpack.c.b16 %v495, %v494
      %v505 = vpack.c.b16 %v497, %v496
      %vm506 = vcmask 523264
      %v508 = vsel %vm506, %v498, 0
      %v511 = vsel %vm506, %v499, 0
      %v514 = vsel %vm506, %v500, 0
      %v517 = vsel %vm506, %v501, 0
      %v520 = vsel %vm506, %v502, 0
      %v523 = vsel %vm506, %v503, 0
      %v526 = vsel %vm506, %v504, 0
      %v529 = vsel %vm506, %v505, 0
      %531 = vmatprep.subr.bf16.mxu0 0
      %532 = vmatpush1.bf16.msra.mxu0 %v462
      %533 = vmatprep.subr.bf16.mxu0 0
      %534 = vmatpush1.bf16.msra.mxu0 %v463
      %535 = vmatprep.subr.bf16.mxu0 0
      %536 = vmatpush1.bf16.msra.mxu0 %v464
      %537 = vmatprep.subr.bf16.mxu0 0
      %538 = vmatpush1.bf16.msra.mxu0 %v465
      %539 = vmatprep.subr.bf16.mxu0 0
      %540 = vmatpush1.bf16.msra.mxu0 0
      %541 = vmatprep.subr.bf16.mxu0 0
      %542 = vmatpush1.bf16.msra.mxu0 0
      %543 = vmatprep.subr.bf16.mxu0 0
      %544 = vmatpush1.bf16.msra.mxu0 0
      %545 = vmatprep.subr.bf16.mxu0 0
      %546 = vmatpush1.bf16.msra.mxu0 0
      %547 = vmatprep.subr.bf16.mxu0 0
      %548 = vmatpush1.bf16.msra.mxu0 0
      %549 = vmatprep.subr.bf16.mxu0 0
      %550 = vmatpush1.bf16.msra.mxu0 0
      %551 = vmatprep.subr.bf16.mxu0 0
      %552 = vmatpush1.bf16.msra.mxu0 0
      %553 = vmatprep.subr.bf16.mxu0 0
      %554 = vmatpush1.bf16.msra.mxu0 0
      %555 = vmatprep.subr.bf16.mxu0 0
      %556 = vmatpush1.bf16.msra.mxu0 0
      %557 = vmatprep.subr.bf16.mxu0 0
      %558 = vmatpush1.bf16.msra.mxu0 0
      %559 = vmatprep.subr.bf16.mxu0 0
      %560 = vmatpush1.bf16.msra.mxu0 0
      %561 = vmatprep.subr.bf16.mxu0 0
      %562 = vmatpush1.bf16.msra.mxu0 0
      %563 = vmatprep.mubr.bf16.mxu0 0
      %564 = vmatmul.mubr.bf16.gmra.mrb[0].mxu0 %v508
      %v565 = vpop.f32.mrb[0].mxu0
      %v566 = vadd.f32 0.0, %v565
      %v567 = vpop.f32.mrb[0].mxu0
      %v568 = vpop.f32.mrb[0].mxu0
      %v569 = vadd.f32 0.0, %v568
      %v570 = vpop.f32.mrb[0].mxu0
      %571 = vmatprep.mubr.bf16.mxu0 0
      %572 = vmatmul.mubr.bf16.gmra.mrb[0].mxu0 %v511
      %v573 = vpop.f32.mrb[0].mxu0
      %v574 = vadd.f32 0.0, %v573
      %v575 = vpop.f32.mrb[0].mxu0
      %v576 = vpop.f32.mrb[0].mxu0
      %v577 = vadd.f32 0.0, %v576
      %v578 = vpop.f32.mrb[0].mxu0
      %579 = vmatprep.mubr.bf16.mxu0 0
      %580 = vmatmul.mubr.bf16.gmra.mrb[0].mxu0 %v514
      %v581 = vpop.f32.mrb[0].mxu0
      %v582 = vadd.f32 0.0, %v581
      %v583 = vpop.f32.mrb[0].mxu0
      %v584 = vpop.f32.mrb[0].mxu0
      %v585 = vadd.f32 0.0, %v584
      %v586 = vpop.f32.mrb[0].mxu0
      %587 = vmatprep.mubr.bf16.mxu0 0
      %588 = vmatmul.mubr.bf16.gmra.mrb[0].mxu0 %v517
      %v589 = vpop.f32.mrb[0].mxu0
      %v590 = vadd.f32 0.0, %v589
      %v591 = vpop.f32.mrb[0].mxu0
      %v592 = vpop.f32.mrb[0].mxu0
      %v593 = vadd.f32 0.0, %v592
      %v594 = vpop.f32.mrb[0].mxu0
      %595 = vmatprep.mubr.bf16.mxu0 0
      %596 = vmatmul.mubr.bf16.gmra.mrb[0].mxu0 %v520
      %v597 = vpop.f32.mrb[0].mxu0
      %v598 = vadd.f32 0.0, %v597
      %v599 = vpop.f32.mrb[0].mxu0
      %v600 = vpop.f32.mrb[0].mxu0
      %v601 = vadd.f32 0.0, %v600
      %v602 = vpop.f32.mrb[0].mxu0
      %603 = vmatprep.mubr.bf16.mxu0 0
      %604 = vmatmul.mubr.bf16.gmra.mrb[0].mxu0 %v523
      %v605 = vpop.f32.mrb[0].mxu0
      %v606 = vadd.f32 0.0, %v605
      %v607 = vpop.f32.mrb[0].mxu0
      %v608 = vpop.f32.mrb[0].mxu0
      %v609 = vadd.f32 0.0, %v608
      %v610 = vpop.f32.mrb[0].mxu0
      %611 = vmatprep.mubr.bf16.mxu0 0
      %612 = vmatmul.mubr.bf16.gmra.mrb[0].mxu0 %v526
      %v613 = vpop.f32.mrb[0].mxu0
      %v614 = vadd.f32 0.0, %v613
      %v615 = vpop.f32.mrb[0].mxu0
      %v616 = vpop.f32.mrb[0].mxu0
      %v617 = vadd.f32 0.0, %v616
      %v618 = vpop.f32.mrb[0].mxu0
      %619 = vmatprep.mubr.bf16.mxu0 0
      %620 = vmatmul.mubr.bf16.gmra.mrb[0].mxu0 %v529
      %v621 = vpop.f32.mrb[0].mxu0
      %v622 = vadd.f32 0.0, %v621
      %v623 = vpop.f32.mrb[0].mxu0
      %v624 = vpop.f32.mrb[0].mxu0
      %v625 = vadd.f32 0.0, %v624
      %v626 = vpop.f32.mrb[0].mxu0
      %627 = vdwg.mxu0
      %636 = vrot.lane.b32.xlu0 %v566, 32
      %v637 = vpop.permute.xlu0 %636
      %638 = vrot.lane.b32.xlu0 %v569, 32
      %v639 = vpop.permute.xlu0 %638
      %640 = vrot.lane.b32.xlu0 %v574, 32
      %v641 = vpop.permute.xlu0 %640
      %642 = vrot.lane.b32.xlu0 %v577, 32
      %v643 = vpop.permute.xlu0 %642
      %644 = vrot.lane.b32.xlu0 %v582, 32
      %v645 = vpop.permute.xlu0 %644
      %646 = vrot.lane.b32.xlu0 %v585, 32
      %v647 = vpop.permute.xlu0 %646
      %648 = vrot.lane.b32.xlu0 %v590, 32
      %v649 = vpop.permute.xlu0 %648
      %650 = vrot.lane.b32.xlu0 %v593, 32
      %v651 = vpop.permute.xlu0 %650
      %668 = vrot.lane.b32.xlu0 %v598, 64
      %v669 = vpop.permute.xlu0 %668
      %670 = vrot.lane.b32.xlu0 %v601, 64
      %v671 = vpop.permute.xlu0 %670
      %672 = vrot.lane.b32.xlu0 %v606, 64
      %v673 = vpop.permute.xlu0 %672
      %674 = vrot.lane.b32.xlu0 %v609, 64
      %v675 = vpop.permute.xlu0 %674
      %676 = vrot.lane.b32.xlu0 %v614, 64
      %v677 = vpop.permute.xlu0 %676
      %678 = vrot.lane.b32.xlu0 %v617, 64
      %v679 = vpop.permute.xlu0 %678
      %680 = vrot.lane.b32.xlu0 %v622, 64
      %v681 = vpop.permute.xlu0 %680
      %682 = vrot.lane.b32.xlu0 %v625, 64
      %v683 = vpop.permute.xlu0 %682
      %v692 = vsel %vm376, %v454, %v637
      %v693 = vsel %vm376, %v455, %v639
      %v694 = vsel %vm376, %v456, %v641
      %v695 = vsel %vm376, %v457, %v643
      %v696 = vsel %vm376, %v458, %v645
      %v697 = vsel %vm376, %v459, %v647
      %v698 = vsel %vm376, %v460, %v649
      %v699 = vsel %vm376, %v461, %v651
      %v700 = vsel %vm506, %v692, %v669
      %v701 = vsel %vm506, %v693, %v671
      %v702 = vsel %vm506, %v694, %v673
      %v703 = vsel %vm506, %v695, %v675
      %v704 = vsel %vm506, %v696, %v677
      %v705 = vsel %vm506, %v697, %v679
      %v706 = vsel %vm506, %v698, %v681
      %v707 = vsel %vm506, %v699, %v683
      %v708 = vpack.c.bf16 %v701, %v700
      %v709 = vpack.c.bf16 %v703, %v702
      %v710 = vpack.c.bf16 %v705, %v704
      %v711 = vpack.c.bf16 %v707, %v706
      %v712 = vld [vmem:[%s2 + $0x18] sm:$0xf]
      %v713 = vld [vmem:[%s2 + $0x1c] sm:$0xf]
      %v714 = vld [vmem:[%s2 + $0x20] sm:$0xf]
      %v715 = vld [vmem:[%s2 + $0x24] sm:$0xf]
      %v716 = vld [vmem:[%s2 + $0x28] sm:$0xf]
      %v717 = vld [vmem:[%s2 + $0x2c] sm:$0xf]
      %v718 = vld [vmem:[%s2 + $0x30] sm:$0xf]
      %v719 = vld [vmem:[%s2 + $0x34] sm:$0xf]
      %v720 = vld [vmem:[%s2 + $0x38] sm:$0xf]
      %v721 = vld [vmem:[%s2 + $0x3c] sm:$0xf]
      %v722 = vld [vmem:[%s2 + $0x40] sm:$0xf]
      %v723 = vld [vmem:[%s2 + $0x44] sm:$0xf]
      %v724 = vlaneseq
      %v725 = vshrl.u32 %v724, 7
      %v726 = vsub.s32 2, %v725
      %v727 = vrot.slane %v248, %v726
      %v740 = vunpack.c.l.b16 %v712
      %v741 = vunpack.c.l.b16 %v713
      %v742 = vunpack.c.l.b16 %v714
      %v743 = vunpack.c.l.b16 %v715
      %v744 = vunpack.c.l.b16 %v716
      %v745 = vunpack.c.l.b16 %v717
      %v746 = vunpack.c.l.b16 %v718
      %v747 = vunpack.c.l.b16 %v719
      %v748 = vunpack.c.l.b16 %v720
      %v749 = vunpack.c.l.b16 %v721
      %v750 = vunpack.c.l.b16 %v722
      %v751 = vunpack.c.l.b16 %v723
      %v752 = vpack.c.b16 %v741, %v740
      %v753 = vpack.c.b16 %v743, %v742
      %v754 = vpack.c.b16 %v745, %v744
      %v755 = vpack.c.b16 %v747, %v746
      %v756 = vpack.c.b16 %v749, %v748
      %v757 = vpack.c.b16 %v751, %v750
      %vm764 = vcmask 785408
      %v766 = vsel %vm764, %v708, 0
      %v769 = vsel %vm764, %v709, 0
      %v772 = vsel %vm764, %v710, 0
      %v775 = vsel %vm764, %v711, 0
      %777 = vmatprep.subr.bf16.mxu0 0
      %778 = vmatpush1.bf16.msra.mxu0 %v752
      %779 = vmatprep.subr.bf16.mxu0 0
      %780 = vmatpush1.bf16.msra.mxu0 %v753
      %781 = vmatprep.subr.bf16.mxu0 0
      %782 = vmatpush1.bf16.msra.mxu0 %v754
      %783 = vmatprep.subr.bf16.mxu0 0
      %784 = vmatpush1.bf16.msra.mxu0 %v755
      %785 = vmatprep.subr.bf16.mxu0 0
      %786 = vmatpush1.bf16.msra.mxu0 %v756
      %787 = vmatprep.subr.bf16.mxu0 0
      %788 = vmatpush1.bf16.msra.mxu0 %v757
      %789 = vmatprep.subr.bf16.mxu0 0
      %790 = vmatpush1.bf16.msra.mxu0 0
      %791 = vmatprep.subr.bf16.mxu0 0
      %792 = vmatpush1.bf16.msra.mxu0 0
      %793 = vmatprep.subr.bf16.mxu0 0
      %794 = vmatpush1.bf16.msra.mxu0 0
      %795 = vmatprep.subr.bf16.mxu0 0
      %796 = vmatpush1.bf16.msra.mxu0 0
      %797 = vmatprep.subr.bf16.mxu0 0
      %798 = vmatpush1.bf16.msra.mxu0 0
      %799 = vmatprep.subr.bf16.mxu0 0
      %800 = vmatpush1.bf16.msra.mxu0 0
      %801 = vmatprep.subr.bf16.mxu0 0
      %802 = vmatpush1.bf16.msra.mxu0 0
      %803 = vmatprep.subr.bf16.mxu0 0
      %804 = vmatpush1.bf16.msra.mxu0 0
      %805 = vmatprep.subr.bf16.mxu0 0
      %806 = vmatpush1.bf16.msra.mxu0 0
      %807 = vmatprep.subr.bf16.mxu0 0
      %808 = vmatpush1.bf16.msra.mxu0 0
      %809 = vmatprep.mubr.bf16.mxu0 0
      %810 = vmatmul.mubr.bf16.gmra.mrb[0].mxu0 %v766
      %v811 = vpop.f32.mrb[0].mxu0
      %v812 = vadd.f32 %v727, %v811
      %v813 = vpop.f32.mrb[0].mxu0
      %v814 = vpop.f32.mrb[0].mxu0
      %v815 = vadd.f32 %v727, %v814
      %v816 = vpop.f32.mrb[0].mxu0
      %817 = vmatprep.mubr.bf16.mxu0 0
      %818 = vmatmul.mubr.bf16.gmra.mrb[0].mxu0 %v769
      %v819 = vpop.f32.mrb[0].mxu0
      %v820 = vadd.f32 %v727, %v819
      %v821 = vpop.f32.mrb[0].mxu0
      %v822 = vpop.f32.mrb[0].mxu0
      %v823 = vadd.f32 %v727, %v822
      %v824 = vpop.f32.mrb[0].mxu0
      %825 = vmatprep.mubr.bf16.mxu0 0
      %826 = vmatmul.mubr.bf16.gmra.mrb[0].mxu0 %v772
      %v827 = vpop.f32.mrb[0].mxu0
      %v828 = vadd.f32 %v727, %v827
      %v829 = vpop.f32.mrb[0].mxu0
      %v830 = vpop.f32.mrb[0].mxu0
      %v831 = vadd.f32 %v727, %v830
      %v832 = vpop.f32.mrb[0].mxu0
      %833 = vmatprep.mubr.bf16.mxu0 0
      %834 = vmatmul.mubr.bf16.gmra.mrb[0].mxu0 %v775
      %v835 = vpop.f32.mrb[0].mxu0
      %v836 = vadd.f32 %v727, %v835
      %v837 = vpop.f32.mrb[0].mxu0
      %v838 = vpop.f32.mrb[0].mxu0
      %v839 = vadd.f32 %v727, %v838
      %v840 = vpop.f32.mrb[0].mxu0
      %841 = vdwg.mxu0
      %v842 = vmax.f32 %v812, 0.0
      %v843 = vmax.f32 %v815, 0.0
      %v844 = vmax.f32 %v820, 0.0
      %v845 = vmax.f32 %v823, 0.0
      %v846 = vmax.f32 %v828, 0.0
      %v847 = vmax.f32 %v831, 0.0
      %v848 = vmax.f32 %v836, 0.0
      %v849 = vmax.f32 %v839, 0.0
      %v850 = vsel %vm376, %v842, 0.0
      %v851 = vsel %vm376, %v843, 0.0
      %v852 = vadd.f32 %v850, %v851
      %v853 = vsel %vm376, %v844, 0.0
      %v854 = vadd.f32 %v852, %v853
      %v855 = vsel %vm376, %v845, 0.0
      %v856 = vadd.f32 %v854, %v855
      %v857 = vsel %vm376, %v846, 0.0
      %v858 = vadd.f32 %v856, %v857
      %v859 = vsel %vm376, %v847, 0.0
      %v860 = vadd.f32 %v858, %v859
      %v861 = vsel %vm376, %v848, 0.0
      %v862 = vadd.f32 %v860, %v861
      %v863 = vsel %vm376, %v849, 0.0
      %v864 = vadd.f32 %v862, %v863
      %865 = vadd.xlane.f32.xlu0 %v864
      %v866 = vpop.xlane.xlu0 %865
      %v867 = vrot.slane %v866, 4
      %v868 = vadd.f32 %v866, %v867
      %v869 = vrot.slane %v868, 2
      %v870 = vadd.f32 %v868, %v869
      %v871 = vrot.slane %v870, 1
      %v872 = vadd.f32 %v870, %v871
      %s873 = vtos %v872
      %v874 = vmul.f32 %v842, %v842
      %v875 = vmul.f32 %v843, %v843
      %v876 = vmul.f32 %v844, %v844
      %v877 = vmul.f32 %v845, %v845
      %v878 = vmul.f32 %v846, %v846
      %v879 = vmul.f32 %v847, %v847
      %v880 = vmul.f32 %v848, %v848
      %v881 = vmul.f32 %v849, %v849
      %v882 = vsel %vm376, %v874, 0.0
      %v883 = vsel %vm376, %v875, 0.0
      %v884 = vadd.f32 %v882, %v883
      %v885 = vsel %vm376, %v876, 0.0
      %v886 = vadd.f32 %v884, %v885
      %v887 = vsel %vm376, %v877, 0.0
      %v888 = vadd.f32 %v886, %v887
      %v889 = vsel %vm376, %v878, 0.0
      %v890 = vadd.f32 %v888, %v889
      %v891 = vsel %vm376, %v879, 0.0
      %v892 = vadd.f32 %v890, %v891
      %v893 = vsel %vm376, %v880, 0.0
      %v894 = vadd.f32 %v892, %v893
      %v895 = vsel %vm376, %v881, 0.0
      %v896 = vadd.f32 %v894, %v895
      %897 = vadd.xlane.f32.xlu0 %v896
      %v898 = vpop.xlane.xlu0 %897
      %v899 = vrot.slane %v898, 4
      %v900 = vadd.f32 %v898, %v899
      %v901 = vrot.slane %v900, 2
      %v902 = vadd.f32 %v900, %v901
      %v903 = vrot.slane %v902, 1
      %v904 = vadd.f32 %v902, %v903
      %s905 = vtos %v904
      %s906 = smul.f32 %s873, 0.00048828125
      %s907 = smul.f32 %s905, 0.00048828125
      %s908 = smul.f32 %s906, %s906
      %s909 = ssub.f32 %s907, %s908
      %s910 = smax.f32 %s909, 0.0
      %v911 = vstv %s910
      %v912 = vrsqrt.pop %v911
      %v913 = vmul.f32 %v911, %v912
      %vm914 = vcmp.eq.f32.partialorder %v911, inf
      %v915 = vsel %vm914, %v911, %v913
      %vm916 = vcmp.eq.f32.partialorder %v911, 0.0
      %v917 = vand.u32 %v911, 2147483648
      %v918 = vsel %vm916, %v917, %v915
      %s919 = vtos %v918
      %s920 = sadd.f32 %s919, 1e-05
      %v921 = vstv %s920
      %v922 = vrcp.pop %v921
      %v923 = vmul.f32 %v248, %v922
      %v924 = vstv %s906
      %v925 = vsub.f32 %v842, %v924
      %v926 = vsub.f32 %v843, %v924
      %v927 = vsub.f32 %v844, %v924
      %v928 = vsub.f32 %v845, %v924
      %v929 = vsub.f32 %v846, %v924
      %v930 = vsub.f32 %v847, %v924
      %v931 = vsub.f32 %v848, %v924
      %v932 = vsub.f32 %v849, %v924
      %v933 = vlaneseq
      %v934 = vshrl.u32 %v933, 7
      %v935 = vsub.s32 3, %v934
      %v936 = vrot.slane %v923, %v935
      %v937 = vmul.f32 %v925, %v936
      %v938 = vmul.f32 %v926, %v936
      %v939 = vmul.f32 %v927, %v936
      %v940 = vmul.f32 %v928, %v936
      %v941 = vmul.f32 %v929, %v936
      %v942 = vmul.f32 %v930, %v936
      %v943 = vmul.f32 %v931, %v936
      %v944 = vmul.f32 %v932, %v936
      %v945 = vlaneseq
      %v946 = vshrl.u32 %v945, 7
      %v947 = vsub.s32 4, %v946
      %v948 = vrot.slane %v248, %v947
      %v949 = vadd.f32 %v937, %v948
      %v950 = vadd.f32 %v938, %v948
      %v951 = vadd.f32 %v939, %v948
      %v952 = vadd.f32 %v940, %v948
      %v953 = vadd.f32 %v941, %v948
      %v954 = vadd.f32 %v942, %v948
      %v955 = vadd.f32 %v943, %v948
      %v956 = vadd.f32 %v944, %v948
      %v957 = vpack.c.bf16 %v950, %v949
      %v958 = vpack.c.bf16 %v952, %v951
      %v959 = vpack.c.bf16 %v954, %v953
      %v960 = vpack.c.bf16 %v956, %v955
      %961 = vmatprep.subr.bf16.mxu0 0
      %962 = vmatpush1.bf16.msra.mxu0 %v957
      %963 = vmatprep.subr.bf16.mxu0 0
      %964 = vmatpush1.bf16.msra.mxu0 %v958
      %965 = vmatprep.subr.bf16.mxu0 0
      %966 = vmatpush1.bf16.msra.mxu0 %v959
      %967 = vmatprep.subr.bf16.mxu0 0
      %968 = vmatpush1.bf16.msra.mxu0 %v960
      %969 = vmatprep.subr.bf16.mxu0 0
      %970 = vmatpush1.bf16.msra.mxu0 0
      %971 = vmatprep.subr.bf16.mxu0 0
      %972 = vmatpush1.bf16.msra.mxu0 0
      %973 = vmatprep.subr.bf16.mxu0 0
      %974 = vmatpush1.bf16.msra.mxu0 0
      %975 = vmatprep.subr.bf16.mxu0 0
      %976 = vmatpush1.bf16.msra.mxu0 0
      %977 = vmatprep.subr.bf16.mxu0 0
      %978 = vmatpush1.bf16.msra.mxu0 0
      %979 = vmatprep.subr.bf16.mxu0 0
      %980 = vmatpush1.bf16.msra.mxu0 0
      %981 = vmatprep.subr.bf16.mxu0 0
      %982 = vmatpush1.bf16.msra.mxu0 0
      %983 = vmatprep.subr.bf16.mxu0 0
      %984 = vmatpush1.bf16.msra.mxu0 0
      %985 = vmatprep.subr.bf16.mxu0 0
      %986 = vmatpush1.bf16.msra.mxu0 0
      %987 = vmatprep.subr.bf16.mxu0 0
      %988 = vmatpush1.bf16.msra.mxu0 0
      %989 = vmatprep.subr.bf16.mxu0 0
      %990 = vmatpush1.bf16.msra.mxu0 0
      %991 = vmatprep.subr.bf16.mxu0 0
      %992 = vmatpush1.bf16.msra.mxu0 0
      %993 = vmatprep.mubr.bf16.mxu0 0
      %994 = vmatmul.mubr.bf16.gmra.mrb[0].mxu0 %v508
      %v995 = vpop.f32.mrb[0].mxu0
      %v996 = vadd.f32 0.0, %v995
      %v997 = vpop.f32.mrb[0].mxu0
      %v998 = vpop.f32.mrb[0].mxu0
      %v999 = vadd.f32 0.0, %v998
      %v1000 = vpop.f32.mrb[0].mxu0
      %1001 = vmatprep.mubr.bf16.mxu0 0
      %1002 = vmatmul.mubr.bf16.gmra.mrb[0].mxu0 %v511
      %v1003 = vpop.f32.mrb[0].mxu0
      %v1004 = vadd.f32 0.0, %v1003
      %v1005 = vpop.f32.mrb[0].mxu0
      %v1006 = vpop.f32.mrb[0].mxu0
      %v1007 = vadd.f32 0.0, %v1006
      %v1008 = vpop.f32.mrb[0].mxu0
      %1009 = vmatprep.mubr.bf16.mxu0 0
      %1010 = vmatmul.mubr.bf16.gmra.mrb[0].mxu0 %v514
      %v1011 = vpop.f32.mrb[0].mxu0
      %v1012 = vadd.f32 0.0, %v1011
      %v1013 = vpop.f32.mrb[0].mxu0
      %v1014 = vpop.f32.mrb[0].mxu0
      %v1015 = vadd.f32 0.0, %v1014
      %v1016 = vpop.f32.mrb[0].mxu0
      %1017 = vmatprep.mubr.bf16.mxu0 0
      %1018 = vmatmul.mubr.bf16.gmra.mrb[0].mxu0 %v517
      %v1019 = vpop.f32.mrb[0].mxu0
      %v1020 = vadd.f32 0.0, %v1019
      %v1021 = vpop.f32.mrb[0].mxu0
      %v1022 = vpop.f32.mrb[0].mxu0
      %v1023 = vadd.f32 0.0, %v1022
      %v1024 = vpop.f32.mrb[0].mxu0
      %1025 = vmatprep.mubr.bf16.mxu0 0
      %1026 = vmatmul.mubr.bf16.gmra.mrb[0].mxu0 %v520
      %v1027 = vpop.f32.mrb[0].mxu0
      %v1028 = vadd.f32 0.0, %v1027
      %v1029 = vpop.f32.mrb[0].mxu0
      %v1030 = vpop.f32.mrb[0].mxu0
      %v1031 = vadd.f32 0.0, %v1030
      %v1032 = vpop.f32.mrb[0].mxu0
      %1033 = vmatprep.mubr.bf16.mxu0 0
      %1034 = vmatmul.mubr.bf16.gmra.mrb[0].mxu0 %v523
      %v1035 = vpop.f32.mrb[0].mxu0
      %v1036 = vadd.f32 0.0, %v1035
      %v1037 = vpop.f32.mrb[0].mxu0
      %v1038 = vpop.f32.mrb[0].mxu0
      %v1039 = vadd.f32 0.0, %v1038
      %v1040 = vpop.f32.mrb[0].mxu0
      %1041 = vmatprep.mubr.bf16.mxu0 0
      %1042 = vmatmul.mubr.bf16.gmra.mrb[0].mxu0 %v526
      %v1043 = vpop.f32.mrb[0].mxu0
      %v1044 = vadd.f32 0.0, %v1043
      %v1045 = vpop.f32.mrb[0].mxu0
      %v1046 = vpop.f32.mrb[0].mxu0
      %v1047 = vadd.f32 0.0, %v1046
      %v1048 = vpop.f32.mrb[0].mxu0
      %1049 = vmatprep.mubr.bf16.mxu0 0
      %1050 = vmatmul.mubr.bf16.gmra.mrb[0].mxu0 %v529
      %v1051 = vpop.f32.mrb[0].mxu0
      %v1052 = vadd.f32 0.0, %v1051
      %v1053 = vpop.f32.mrb[0].mxu0
      %v1054 = vpop.f32.mrb[0].mxu0
      %v1055 = vadd.f32 0.0, %v1054
      %v1056 = vpop.f32.mrb[0].mxu0
      %1057 = vdwg.mxu0
      %1066 = vrot.lane.b32.xlu0 %v996, 32
      %v1067 = vpop.permute.xlu0 %1066
      %1068 = vrot.lane.b32.xlu0 %v999, 32
      %v1069 = vpop.permute.xlu0 %1068
      %1070 = vrot.lane.b32.xlu0 %v1004, 32
      %v1071 = vpop.permute.xlu0 %1070
      %1072 = vrot.lane.b32.xlu0 %v1007, 32
      %v1073 = vpop.permute.xlu0 %1072
      %1074 = vrot.lane.b32.xlu0 %v1012, 32
      %v1075 = vpop.permute.xlu0 %1074
      %1076 = vrot.lane.b32.xlu0 %v1015, 32
      %v1077 = vpop.permute.xlu0 %1076
      %1078 = vrot.lane.b32.xlu0 %v1020, 32
      %v1079 = vpop.permute.xlu0 %1078
      %1080 = vrot.lane.b32.xlu0 %v1023, 32
      %v1081 = vpop.permute.xlu0 %1080
      %1098 = vrot.lane.b32.xlu0 %v1028, 64
      %v1099 = vpop.permute.xlu0 %1098
      %1100 = vrot.lane.b32.xlu0 %v1031, 64
      %v1101 = vpop.permute.xlu0 %1100
      %1102 = vrot.lane.b32.xlu0 %v1036, 64
      %v1103 = vpop.permute.xlu0 %1102
      %1104 = vrot.lane.b32.xlu0 %v1039, 64
      %v1105 = vpop.permute.xlu0 %1104
      %1106 = vrot.lane.b32.xlu0 %v1044, 64
      %v1107 = vpop.permute.xlu0 %1106
      %1108 = vrot.lane.b32.xlu0 %v1047, 64
      %v1109 = vpop.permute.xlu0 %1108
      %1110 = vrot.lane.b32.xlu0 %v1052, 64
      %v1111 = vpop.permute.xlu0 %1110
      %1112 = vrot.lane.b32.xlu0 %v1055, 64
      %v1113 = vpop.permute.xlu0 %1112
      %v1122 = vsel %vm376, %v949, %v1067
      %v1123 = vsel %vm376, %v950, %v1069
      %v1124 = vsel %vm376, %v951, %v1071
      %v1125 = vsel %vm376, %v952, %v1073
      %v1126 = vsel %vm376, %v953, %v1075
      %v1127 = vsel %vm376, %v954, %v1077
      %v1128 = vsel %vm376, %v955, %v1079
      %v1129 = vsel %vm376, %v956, %v1081
      %v1130 = vsel %vm506, %v1122, %v1099
      %v1131 = vsel %vm506, %v1123, %v1101
      %v1132 = vsel %vm506, %v1124, %v1103
      %v1133 = vsel %vm506, %v1125, %v1105
      %v1134 = vsel %vm506, %v1126, %v1107
      %v1135 = vsel %vm506, %v1127, %v1109
      %v1136 = vsel %vm506, %v1128, %v1111
      %v1137 = vsel %vm506, %v1129, %v1113
      %v1138 = vpack.c.bf16 %v1131, %v1130
      %v1139 = vpack.c.bf16 %v1133, %v1132
      %v1140 = vpack.c.bf16 %v1135, %v1134
      %v1141 = vpack.c.bf16 %v1137, %v1136
      %v1142 = vld [vmem:[%s2 + $0x48] sm:$0xf]
      %v1143 = vld [vmem:[%s2 + $0x4c] sm:$0xf]
      %v1144 = vld [vmem:[%s2 + $0x50] sm:$0xf]
      %v1145 = vld [vmem:[%s2 + $0x54] sm:$0xf]
      %v1146 = vld [vmem:[%s2 + $0x58] sm:$0xf]
      %v1147 = vld [vmem:[%s2 + $0x5c] sm:$0xf]
      %v1148 = vld [vmem:[%s2 + $0x60] sm:$0xf]
      %v1149 = vld [vmem:[%s2 + $0x64] sm:$0xf]
      %v1150 = vld [vmem:[%s2 + $0x68] sm:$0xf]
      %v1151 = vld [vmem:[%s2 + $0x6c] sm:$0xf]
      %v1152 = vld [vmem:[%s2 + $0x70] sm:$0xf]
      %v1153 = vld [vmem:[%s2 + $0x74] sm:$0xf]
      %v1154 = vlaneseq
      %v1155 = vshrl.u32 %v1154, 7
      %v1156 = vsub.s32 5, %v1155
      %v1157 = vrot.slane %v248, %v1156
      %v1170 = vunpack.c.l.b16 %v1142
      %v1171 = vunpack.c.l.b16 %v1143
      %v1172 = vunpack.c.l.b16 %v1144
      %v1173 = vunpack.c.l.b16 %v1145
      %v1174 = vunpack.c.l.b16 %v1146
      %v1175 = vunpack.c.l.b16 %v1147
      %v1176 = vunpack.c.l.b16 %v1148
      %v1177 = vunpack.c.l.b16 %v1149
      %v1178 = vunpack.c.l.b16 %v1150
      %v1179 = vunpack.c.l.b16 %v1151
      %v1180 = vunpack.c.l.b16 %v1152
      %v1181 = vunpack.c.l.b16 %v1153
      %v1182 = vpack.c.b16 %v1171, %v1170
      %v1183 = vpack.c.b16 %v1173, %v1172
      %v1184 = vpack.c.b16 %v1175, %v1174
      %v1185 = vpack.c.b16 %v1177, %v1176
      %v1186 = vpack.c.b16 %v1179, %v1178
      %v1187 = vpack.c.b16 %v1181, %v1180
      %v1195 = vsel %vm764, %v1138, 0
      %v1198 = vsel %vm764, %v1139, 0
      %v1201 = vsel %vm764, %v1140, 0
      %v1204 = vsel %vm764, %v1141, 0
      %1206 = vmatprep.subr.bf16.mxu0 0
      %1207 = vmatpush1.bf16.msra.mxu0 %v1182
      %1208 = vmatprep.subr.bf16.mxu0 0
      %1209 = vmatpush1.bf16.msra.mxu0 %v1183
      %1210 = vmatprep.subr.bf16.mxu0 0
      %1211 = vmatpush1.bf16.msra.mxu0 %v1184
      %1212 = vmatprep.subr.bf16.mxu0 0
      %1213 = vmatpush1.bf16.msra.mxu0 %v1185
      %1214 = vmatprep.subr.bf16.mxu0 0
      %1215 = vmatpush1.bf16.msra.mxu0 %v1186
      %1216 = vmatprep.subr.bf16.mxu0 0
      %1217 = vmatpush1.bf16.msra.mxu0 %v1187
      %1218 = vmatprep.subr.bf16.mxu0 0
      %1219 = vmatpush1.bf16.msra.mxu0 0
      %1220 = vmatprep.subr.bf16.mxu0 0
      %1221 = vmatpush1.bf16.msra.mxu0 0
      %1222 = vmatprep.subr.bf16.mxu0 0
      %1223 = vmatpush1.bf16.msra.mxu0 0
      %1224 = vmatprep.subr.bf16.mxu0 0
      %1225 = vmatpush1.bf16.msra.mxu0 0
      %1226 = vmatprep.subr.bf16.mxu0 0
      %1227 = vmatpush1.bf16.msra.mxu0 0
      %1228 = vmatprep.subr.bf16.mxu0 0
      %1229 = vmatpush1.bf16.msra.mxu0 0
      %1230 = vmatprep.subr.bf16.mxu0 0
      %1231 = vmatpush1.bf16.msra.mxu0 0
      %1232 = vmatprep.subr.bf16.mxu0 0
      %1233 = vmatpush1.bf16.msra.mxu0 0
      %1234 = vmatprep.subr.bf16.mxu0 0
      %1235 = vmatpush1.bf16.msra.mxu0 0
      %1236 = vmatprep.subr.bf16.mxu0 0
      %1237 = vmatpush1.bf16.msra.mxu0 0
      %1238 = vmatprep.mubr.bf16.mxu0 0
      %1239 = vmatmul.mubr.bf16.gmra.mrb[0].mxu0 %v1195
      %v1240 = vpop.f32.mrb[0].mxu0
      %v1241 = vadd.f32 %v1157, %v1240
      %v1242 = vpop.f32.mrb[0].mxu0
      %v1243 = vpop.f32.mrb[0].mxu0
      %v1244 = vadd.f32 %v1157, %v1243
      %v1245 = vpop.f32.mrb[0].mxu0
      %1246 = vmatprep.mubr.bf16.mxu0 0
      %1247 = vmatmul.mubr.bf16.gmra.mrb[0].mxu0 %v1198
      %v1248 = vpop.f32.mrb[0].mxu0
      %v1249 = vadd.f32 %v1157, %v1248
      %v1250 = vpop.f32.mrb[0].mxu0
      %v1251 = vpop.f32.mrb[0].mxu0
      %v1252 = vadd.f32 %v1157, %v1251
      %v1253 = vpop.f32.mrb[0].mxu0
      %1254 = vmatprep.mubr.bf16.mxu0 0
      %1255 = vmatmul.mubr.bf16.gmra.mrb[0].mxu0 %v1201
      %v1256 = vpop.f32.mrb[0].mxu0
      %v1257 = vadd.f32 %v1157, %v1256
      %v1258 = vpop.f32.mrb[0].mxu0
      %v1259 = vpop.f32.mrb[0].mxu0
      %v1260 = vadd.f32 %v1157, %v1259
      %v1261 = vpop.f32.mrb[0].mxu0
      %1262 = vmatprep.mubr.bf16.mxu0 0
      %1263 = vmatmul.mubr.bf16.gmra.mrb[0].mxu0 %v1204
      %v1264 = vpop.f32.mrb[0].mxu0
      %v1265 = vadd.f32 %v1157, %v1264
      %v1266 = vpop.f32.mrb[0].mxu0
      %v1267 = vpop.f32.mrb[0].mxu0
      %v1268 = vadd.f32 %v1157, %v1267
      %v1269 = vpop.f32.mrb[0].mxu0
      %1270 = vdwg.mxu0
      %v1271 = vmax.f32 %v1241, 0.0
      %v1272 = vmax.f32 %v1244, 0.0
      %v1273 = vmax.f32 %v1249, 0.0
      %v1274 = vmax.f32 %v1252, 0.0
      %v1275 = vmax.f32 %v1257, 0.0
      %v1276 = vmax.f32 %v1260, 0.0
      %v1277 = vmax.f32 %v1265, 0.0
      %v1278 = vmax.f32 %v1268, 0.0
      %v1279 = vsel %vm376, %v1271, 0.0
      %v1280 = vsel %vm376, %v1272, 0.0
      %v1281 = vadd.f32 %v1279, %v1280
      %v1282 = vsel %vm376, %v1273, 0.0
      %v1283 = vadd.f32 %v1281, %v1282
      %v1284 = vsel %vm376, %v1274, 0.0
      %v1285 = vadd.f32 %v1283, %v1284
      %v1286 = vsel %vm376, %v1275, 0.0
      %v1287 = vadd.f32 %v1285, %v1286
      %v1288 = vsel %vm376, %v1276, 0.0
      %v1289 = vadd.f32 %v1287, %v1288
      %v1290 = vsel %vm376, %v1277, 0.0
      %v1291 = vadd.f32 %v1289, %v1290
      %v1292 = vsel %vm376, %v1278, 0.0
      %v1293 = vadd.f32 %v1291, %v1292
      %1294 = vadd.xlane.f32.xlu0 %v1293
      %v1295 = vpop.xlane.xlu0 %1294
      %v1296 = vrot.slane %v1295, 4
      %v1297 = vadd.f32 %v1295, %v1296
      %v1298 = vrot.slane %v1297, 2
      %v1299 = vadd.f32 %v1297, %v1298
      %v1300 = vrot.slane %v1299, 1
      %v1301 = vadd.f32 %v1299, %v1300
      %s1302 = vtos %v1301
      %v1303 = vmul.f32 %v1271, %v1271
      %v1304 = vmul.f32 %v1272, %v1272
      %v1305 = vmul.f32 %v1273, %v1273
      %v1306 = vmul.f32 %v1274, %v1274
      %v1307 = vmul.f32 %v1275, %v1275
      %v1308 = vmul.f32 %v1276, %v1276
      %v1309 = vmul.f32 %v1277, %v1277
      %v1310 = vmul.f32 %v1278, %v1278
      %v1311 = vsel %vm376, %v1303, 0.0
      %v1312 = vsel %vm376, %v1304, 0.0
      %v1313 = vadd.f32 %v1311, %v1312
      %v1314 = vsel %vm376, %v1305, 0.0
      %v1315 = vadd.f32 %v1313, %v1314
      %v1316 = vsel %vm376, %v1306, 0.0
      %v1317 = vadd.f32 %v1315, %v1316
      %v1318 = vsel %vm376, %v1307, 0.0
      %v1319 = vadd.f32 %v1317, %v1318
      %v1320 = vsel %vm376, %v1308, 0.0
      %v1321 = vadd.f32 %v1319, %v1320
      %v1322 = vsel %vm376, %v1309, 0.0
      %v1323 = vadd.f32 %v1321, %v1322
      %v1324 = vsel %vm376, %v1310, 0.0
      %v1325 = vadd.f32 %v1323, %v1324
      %1326 = vadd.xlane.f32.xlu0 %v1325
      %v1327 = vpop.xlane.xlu0 %1326
      %v1328 = vrot.slane %v1327, 4
      %v1329 = vadd.f32 %v1327, %v1328
      %v1330 = vrot.slane %v1329, 2
      %v1331 = vadd.f32 %v1329, %v1330
      %v1332 = vrot.slane %v1331, 1
      %v1333 = vadd.f32 %v1331, %v1332
      %s1334 = vtos %v1333
      %s1335 = smul.f32 %s1302, 0.00048828125
      %s1336 = smul.f32 %s1334, 0.00048828125
      %s1337 = smul.f32 %s1335, %s1335
      %s1338 = ssub.f32 %s1336, %s1337
      %s1339 = smax.f32 %s1338, 0.0
      %v1340 = vstv %s1339
      %v1341 = vrsqrt.pop %v1340
      %v1342 = vmul.f32 %v1340, %v1341
      %vm1343 = vcmp.eq.f32.partialorder %v1340, inf
      %v1344 = vsel %vm1343, %v1340, %v1342
      %vm1345 = vcmp.eq.f32.partialorder %v1340, 0.0
      %v1346 = vand.u32 %v1340, 2147483648
      %v1347 = vsel %vm1345, %v1346, %v1344
      %s1348 = vtos %v1347
      %s1349 = sadd.f32 %s1348, 1e-05
      %v1350 = vstv %s1349
      %v1351 = vrcp.pop %v1350
      %v1352 = vmul.f32 %v248, %v1351
      %v1353 = vstv %s1335
      %v1354 = vsub.f32 %v1271, %v1353
      %v1355 = vsub.f32 %v1272, %v1353
      %v1356 = vsub.f32 %v1273, %v1353
      %v1357 = vsub.f32 %v1274, %v1353
      %v1358 = vsub.f32 %v1275, %v1353
      %v1359 = vsub.f32 %v1276, %v1353
      %v1360 = vsub.f32 %v1277, %v1353
      %v1361 = vsub.f32 %v1278, %v1353
      %v1362 = vlaneseq
      %v1363 = vshrl.u32 %v1362, 7
      %v1364 = vsub.s32 6, %v1363
      %v1365 = vrot.slane %v1352, %v1364
      %v1366 = vmul.f32 %v1354, %v1365
      %v1367 = vmul.f32 %v1355, %v1365
      %v1368 = vmul.f32 %v1356, %v1365
      %v1369 = vmul.f32 %v1357, %v1365
      %v1370 = vmul.f32 %v1358, %v1365
      %v1371 = vmul.f32 %v1359, %v1365
      %v1372 = vmul.f32 %v1360, %v1365
      %v1373 = vmul.f32 %v1361, %v1365
      %v1374 = vlaneseq
      %v1375 = vshrl.u32 %v1374, 7
      %v1376 = vsub.s32 7, %v1375
      %v1377 = vrot.slane %v248, %v1376
      %v1378 = vadd.f32 %v1366, %v1377
      %v1379 = vadd.f32 %v1367, %v1377
      %v1380 = vadd.f32 %v1368, %v1377
      %v1381 = vadd.f32 %v1369, %v1377
      %v1382 = vadd.f32 %v1370, %v1377
      %v1383 = vadd.f32 %v1371, %v1377
      %v1384 = vadd.f32 %v1372, %v1377
      %v1385 = vadd.f32 %v1373, %v1377
      %v1386 = vpack.c.bf16 %v1379, %v1378
      %v1387 = vpack.c.bf16 %v1381, %v1380
      %v1388 = vpack.c.bf16 %v1383, %v1382
      %v1389 = vpack.c.bf16 %v1385, %v1384
      %v1390 = vld [vmem:[%s2 + $0x78] sm:$0xf]
      %v1391 = vld [vmem:[%s2 + $0x7c] sm:$0xf]
      %v1392 = vld [vmem:[%s2 + $0x80] sm:$0xf]
      %v1393 = vld [vmem:[%s2 + $0x84] sm:$0xf]
      %v1394 = vlaneseq
      %v1395 = vshrl.u32 %v1394, 7
      %v1396 = vsub.s32 0, %v1395
      %v1397 = vrot.slane %v249, %v1396
      %v1402 = vunpack.c.l.b16 %v1390
      %v1403 = vunpack.c.l.b16 %v1391
      %v1404 = vunpack.c.l.b16 %v1392
      %v1405 = vunpack.c.l.b16 %v1393
      %v1406 = vpack.c.b16 %v1403, %v1402
      %v1407 = vpack.c.b16 %v1405, %v1404
      %v1411 = vsel %vm376, %v1386, 0
      %v1414 = vsel %vm376, %v1387, 0
      %v1417 = vsel %vm376, %v1388, 0
      %v1420 = vsel %vm376, %v1389, 0
      %1422 = vmatprep.subr.bf16.mxu0 0
      %1423 = vmatpush1.bf16.msra.mxu0 %v1406
      %1424 = vmatprep.subr.bf16.mxu0 0
      %1425 = vmatpush1.bf16.msra.mxu0 %v1407
      %1426 = vmatprep.subr.bf16.mxu0 0
      %1427 = vmatpush1.bf16.msra.mxu0 0
      %1428 = vmatprep.subr.bf16.mxu0 0
      %1429 = vmatpush1.bf16.msra.mxu0 0
      %1430 = vmatprep.subr.bf16.mxu0 0
      %1431 = vmatpush1.bf16.msra.mxu0 0
      %1432 = vmatprep.subr.bf16.mxu0 0
      %1433 = vmatpush1.bf16.msra.mxu0 0
      %1434 = vmatprep.subr.bf16.mxu0 0
      %1435 = vmatpush1.bf16.msra.mxu0 0
      %1436 = vmatprep.subr.bf16.mxu0 0
      %1437 = vmatpush1.bf16.msra.mxu0 0
      %1438 = vmatprep.subr.bf16.mxu0 0
      %1439 = vmatpush1.bf16.msra.mxu0 0
      %1440 = vmatprep.subr.bf16.mxu0 0
      %1441 = vmatpush1.bf16.msra.mxu0 0
      %1442 = vmatprep.subr.bf16.mxu0 0
      %1443 = vmatpush1.bf16.msra.mxu0 0
      %1444 = vmatprep.subr.bf16.mxu0 0
      %1445 = vmatpush1.bf16.msra.mxu0 0
      %1446 = vmatprep.subr.bf16.mxu0 0
      %1447 = vmatpush1.bf16.msra.mxu0 0
      %1448 = vmatprep.subr.bf16.mxu0 0
      %1449 = vmatpush1.bf16.msra.mxu0 0
      %1450 = vmatprep.subr.bf16.mxu0 0
      %1451 = vmatpush1.bf16.msra.mxu0 0
      %1452 = vmatprep.subr.bf16.mxu0 0
      %1453 = vmatpush1.bf16.msra.mxu0 0
      %1454 = vmatprep.mubr.bf16.mxu0 0
      %1455 = vmatmul.mubr.bf16.gmra.mrb[0].mxu0 %v1411
      %v1456 = vpop.f32.mrb[0].mxu0
      %v1457 = vadd.f32 %v1397, %v1456
      %v1458 = vpop.f32.mrb[0].mxu0
      %v1459 = vpop.f32.mrb[0].mxu0
      %v1460 = vadd.f32 %v1397, %v1459
      %v1461 = vpop.f32.mrb[0].mxu0
      %1462 = vmatprep.mubr.bf16.mxu0 0
      %1463 = vmatmul.mubr.bf16.gmra.mrb[0].mxu0 %v1414
      %v1464 = vpop.f32.mrb[0].mxu0
      %v1465 = vadd.f32 %v1397, %v1464
      %v1466 = vpop.f32.mrb[0].mxu0
      %v1467 = vpop.f32.mrb[0].mxu0
      %v1468 = vadd.f32 %v1397, %v1467
      %v1469 = vpop.f32.mrb[0].mxu0
      %1470 = vmatprep.mubr.bf16.mxu0 0
      %1471 = vmatmul.mubr.bf16.gmra.mrb[0].mxu0 %v1417
      %v1472 = vpop.f32.mrb[0].mxu0
      %v1473 = vadd.f32 %v1397, %v1472
      %v1474 = vpop.f32.mrb[0].mxu0
      %v1475 = vpop.f32.mrb[0].mxu0
      %v1476 = vadd.f32 %v1397, %v1475
      %v1477 = vpop.f32.mrb[0].mxu0
      %1478 = vmatprep.mubr.bf16.mxu0 0
      %1479 = vmatmul.mubr.bf16.gmra.mrb[0].mxu0 %v1420
      %v1480 = vpop.f32.mrb[0].mxu0
      %v1481 = vadd.f32 %v1397, %v1480
      %v1482 = vpop.f32.mrb[0].mxu0
      %v1483 = vpop.f32.mrb[0].mxu0
      %v1484 = vadd.f32 %v1397, %v1483
      %v1485 = vpop.f32.mrb[0].mxu0
      %1486 = vdwg.mxu0
      %v1487 = vmax.f32 %v1457, 0.0
      %v1488 = vmax.f32 %v1460, 0.0
      %v1489 = vmax.f32 %v1465, 0.0
      %v1490 = vmax.f32 %v1468, 0.0
      %v1491 = vmax.f32 %v1473, 0.0
      %v1492 = vmax.f32 %v1476, 0.0
      %v1493 = vmax.f32 %v1481, 0.0
      %v1494 = vmax.f32 %v1484, 0.0
      %v1495 = vpack.c.bf16 %v1488, %v1487
      %v1496 = vpack.c.bf16 %v1490, %v1489
      %v1497 = vpack.c.bf16 %v1492, %v1491
      %v1498 = vpack.c.bf16 %v1494, %v1493
      %v1499 = vld [vmem:[%s2 + $0x88] sm:$0xf]
      %v1500 = vld [vmem:[%s2 + $0x8c] sm:$0xf]
      %v1501 = vld [vmem:[%s2 + $0x90] sm:$0xf]
      %v1502 = vld [vmem:[%s2 + $0x94] sm:$0xf]
      %v1503 = vlaneseq
      %v1504 = vshrl.u32 %v1503, 7
      %v1505 = vsub.s32 1, %v1504
      %v1506 = vrot.slane %v249, %v1505
      %v1511 = vunpack.c.l.b16 %v1499
      %v1512 = vunpack.c.l.b16 %v1500
      %v1513 = vunpack.c.l.b16 %v1501
      %v1514 = vunpack.c.l.b16 %v1502
      %v1515 = vpack.c.b16 %v1512, %v1511
      %v1516 = vpack.c.b16 %v1514, %v1513
      %v1520 = vsel %vm376, %v1495, 0
      %v1523 = vsel %vm376, %v1496, 0
      %v1526 = vsel %vm376, %v1497, 0
      %v1529 = vsel %vm376, %v1498, 0
      %1531 = vmatprep.subr.bf16.mxu0 0
      %1532 = vmatpush1.bf16.msra.mxu0 %v1515
      %1533 = vmatprep.subr.bf16.mxu0 0
      %1534 = vmatpush1.bf16.msra.mxu0 %v1516
      %1535 = vmatprep.subr.bf16.mxu0 0
      %1536 = vmatpush1.bf16.msra.mxu0 0
      %1537 = vmatprep.subr.bf16.mxu0 0
      %1538 = vmatpush1.bf16.msra.mxu0 0
      %1539 = vmatprep.subr.bf16.mxu0 0
      %1540 = vmatpush1.bf16.msra.mxu0 0
      %1541 = vmatprep.subr.bf16.mxu0 0
      %1542 = vmatpush1.bf16.msra.mxu0 0
      %1543 = vmatprep.subr.bf16.mxu0 0
      %1544 = vmatpush1.bf16.msra.mxu0 0
      %1545 = vmatprep.subr.bf16.mxu0 0
      %1546 = vmatpush1.bf16.msra.mxu0 0
      %1547 = vmatprep.subr.bf16.mxu0 0
      %1548 = vmatpush1.bf16.msra.mxu0 0
      %1549 = vmatprep.subr.bf16.mxu0 0
      %1550 = vmatpush1.bf16.msra.mxu0 0
      %1551 = vmatprep.subr.bf16.mxu0 0
      %1552 = vmatpush1.bf16.msra.mxu0 0
      %1553 = vmatprep.subr.bf16.mxu0 0
      %1554 = vmatpush1.bf16.msra.mxu0 0
      %1555 = vmatprep.subr.bf16.mxu0 0
      %1556 = vmatpush1.bf16.msra.mxu0 0
      %1557 = vmatprep.subr.bf16.mxu0 0
      %1558 = vmatpush1.bf16.msra.mxu0 0
      %1559 = vmatprep.subr.bf16.mxu0 0
      %1560 = vmatpush1.bf16.msra.mxu0 0
      %1561 = vmatprep.subr.bf16.mxu0 0
      %1562 = vmatpush1.bf16.msra.mxu0 0
      %1563 = vmatprep.mubr.bf16.mxu0 0
      %1564 = vmatmul.mubr.bf16.gmra.mrb[0].mxu0 %v1520
      %v1565 = vpop.f32.mrb[0].mxu0
      %v1566 = vadd.f32 %v1506, %v1565
      %v1567 = vpop.f32.mrb[0].mxu0
      %v1568 = vpop.f32.mrb[0].mxu0
      %v1569 = vadd.f32 %v1506, %v1568
      %v1570 = vpop.f32.mrb[0].mxu0
      %1571 = vmatprep.mubr.bf16.mxu0 0
      %1572 = vmatmul.mubr.bf16.gmra.mrb[0].mxu0 %v1523
      %v1573 = vpop.f32.mrb[0].mxu0
      %v1574 = vadd.f32 %v1506, %v1573
      %v1575 = vpop.f32.mrb[0].mxu0
      %v1576 = vpop.f32.mrb[0].mxu0
      %v1577 = vadd.f32 %v1506, %v1576
      %v1578 = vpop.f32.mrb[0].mxu0
      %1579 = vmatprep.mubr.bf16.mxu0 0
      %1580 = vmatmul.mubr.bf16.gmra.mrb[0].mxu0 %v1526
      %v1581 = vpop.f32.mrb[0].mxu0
      %v1582 = vadd.f32 %v1506, %v1581
      %v1583 = vpop.f32.mrb[0].mxu0
      %v1584 = vpop.f32.mrb[0].mxu0
      %v1585 = vadd.f32 %v1506, %v1584
      %v1586 = vpop.f32.mrb[0].mxu0
      %1587 = vmatprep.mubr.bf16.mxu0 0
      %1588 = vmatmul.mubr.bf16.gmra.mrb[0].mxu0 %v1529
      %v1589 = vpop.f32.mrb[0].mxu0
      %v1590 = vadd.f32 %v1506, %v1589
      %v1591 = vpop.f32.mrb[0].mxu0
      %v1592 = vpop.f32.mrb[0].mxu0
      %v1593 = vadd.f32 %v1506, %v1592
      %v1594 = vpop.f32.mrb[0].mxu0
      %1595 = vdwg.mxu0
      %v1596 = vmax.f32 %v1566, 0.0
      %v1597 = vmax.f32 %v1569, 0.0
      %v1598 = vmax.f32 %v1574, 0.0
      %v1599 = vmax.f32 %v1577, 0.0
      %v1600 = vmax.f32 %v1582, 0.0
      %v1601 = vmax.f32 %v1585, 0.0
      %v1602 = vmax.f32 %v1590, 0.0
      %v1603 = vmax.f32 %v1593, 0.0
      %v1604 = vlaneseq
      %v1605 = vshrl.u32 %v1604, 7
      %v1606 = vsub.s32 2, %v1605
      %v1607 = vrot.slane %v249, %v1606
      %v1608 = vmul.f32 %v1596, %v1607
      %v1609 = vmul.f32 %v1597, %v1607
      %v1610 = vmul.f32 %v1598, %v1607
      %v1611 = vmul.f32 %v1599, %v1607
      %v1612 = vmul.f32 %v1600, %v1607
      %v1613 = vmul.f32 %v1601, %v1607
      %v1614 = vmul.f32 %v1602, %v1607
      %v1615 = vmul.f32 %v1603, %v1607
      %v1616 = vsel %vm376, %v1608, 0.0
      %1617 = vadd.xlane.f32.xlu0 %v1616
      %v1618 = vpop.xlane.xlu0 %1617
      %v1619 = vsel %vm376, %v1609, 0.0
      %1620 = vadd.xlane.f32.xlu0 %v1619
      %v1621 = vpop.xlane.xlu0 %1620
      %v1622 = vsel %vm376, %v1610, 0.0
      %1623 = vadd.xlane.f32.xlu0 %v1622
      %v1624 = vpop.xlane.xlu0 %1623
      %v1625 = vsel %vm376, %v1611, 0.0
      %1626 = vadd.xlane.f32.xlu0 %v1625
      %v1627 = vpop.xlane.xlu0 %1626
      %v1628 = vsel %vm376, %v1612, 0.0
      %1629 = vadd.xlane.f32.xlu0 %v1628
      %v1630 = vpop.xlane.xlu0 %1629
      %v1631 = vsel %vm376, %v1613, 0.0
      %1632 = vadd.xlane.f32.xlu0 %v1631
      %v1633 = vpop.xlane.xlu0 %1632
      %v1634 = vsel %vm376, %v1614, 0.0
      %1635 = vadd.xlane.f32.xlu0 %v1634
      %v1636 = vpop.xlane.xlu0 %1635
      %v1637 = vsel %vm376, %v1615, 0.0
      %1638 = vadd.xlane.f32.xlu0 %v1637
      %v1639 = vpop.xlane.xlu0 %1638
      %v1640 = vlaneseq
      %v1641 = vshrl.u32 %v1640, 7
      %v1642 = vsub.s32 3, %v1641
      %v1643 = vrot.slane %v249, %v1642
      %v1644 = vadd.f32 %v1618, %v1643
      %v1645 = vadd.f32 %v1621, %v1643
      %v1646 = vadd.f32 %v1624, %v1643
      %v1647 = vadd.f32 %v1627, %v1643
      %v1648 = vadd.f32 %v1630, %v1643
      %v1649 = vadd.f32 %v1633, %v1643
      %v1650 = vadd.f32 %v1636, %v1643
      %v1651 = vadd.f32 %v1639, %v1643
      %1653 = vset.pattern.permute.xlu0 0
      %1654 = vperm.xlu0 %1653, %v1644
      %v1655 = vpop.permute.xlu0 %1654
      %1658 = vset.pattern.permute.xlu0 0
      %1659 = vperm.xlu0 %1658, %v1645
      %v1660 = vpop.permute.xlu0 %1659
      %1663 = vset.pattern.permute.xlu0 0
      %1664 = vperm.xlu0 %1663, %v1646
      %v1665 = vpop.permute.xlu0 %1664
      %1668 = vset.pattern.permute.xlu0 0
      %1669 = vperm.xlu0 %1668, %v1647
      %v1670 = vpop.permute.xlu0 %1669
      %1673 = vset.pattern.permute.xlu0 0
      %1674 = vperm.xlu0 %1673, %v1648
      %v1675 = vpop.permute.xlu0 %1674
      %1678 = vset.pattern.permute.xlu0 0
      %1679 = vperm.xlu0 %1678, %v1649
      %v1680 = vpop.permute.xlu0 %1679
      %1683 = vset.pattern.permute.xlu0 0
      %1684 = vperm.xlu0 %1683, %v1650
      %v1685 = vpop.permute.xlu0 %1684
      %1688 = vset.pattern.permute.xlu0 0
      %1689 = vperm.xlu0 %1688, %v1651
      %v1690 = vpop.permute.xlu0 %1689
      %1692 = vst [vmem:[%s221] sm:$0xff] %v1655
      %1693 = vst [vmem:[%s221 + $0x8] sm:$0xff] %v1660
      %1694 = vst [vmem:[%s221 + $0x10] sm:$0xff] %v1665
      %1695 = vst [vmem:[%s221 + $0x18] sm:$0xff] %v1670
      %1696 = vst [vmem:[%s221 + $0x20] sm:$0xff] %v1675
      %1697 = vst [vmem:[%s221 + $0x28] sm:$0xff] %v1680
      %1698 = vst [vmem:[%s221 + $0x30] sm:$0xff] %v1685
      %1699 = vst [vmem:[%s221 + $0x38] sm:$0xff] %v1690
      %s1700 = smul.u32 8, %s15
      %p1701 = scmp.lt.s32.totalorder %s1700, 63
      %s1702 = scalar_select %p1701, %s1700, 63
      %s1703 = smul.addr %s1702, 8
      %s1704 = scalar_lea.vmem %s4, %s1703
      // Predicated region
      $region37: #{relational_gene_network.1} parent=35 // pred_check
        %p1705 = pneg %p127
      $region38: #{relational_gene_network.1} parent=35 // pred_check_branch
        %1707 = sbr.rel (%p1705) target = $region40
      $region39: #{relational_gene_network.1} parent=35 // pred_region
        %s1708 = smul.u32 8, %s15
      $region40: #{relational_gene_network.1} parent=35 // pred_fallthru
        _
    $region36: #{relational_gene_network.1} parent=5 // pred_fallthru
      _
    %p1709 = scmp.le.s32.totalorder 2, %s10
    // Predicated region
    $region41: #{relational_gene_network.1} parent=5 // pred_check
      %p1710 = pneg %p1709
    $region42: #{relational_gene_network.1} parent=5 // pred_check_branch
      %1712 = sbr.rel (%p1710) target = $region44
    $region43: #{relational_gene_network.1} parent=5 // pred_region
      %s1713 = ssub.s32 %s10, 2
      // Predicated region
      $region45: #{relational_gene_network.1} parent=43 // pred_check
        %p1714 = pneg %p133
      $region46: #{relational_gene_network.1} parent=43 // pred_check_branch
        %1716 = sbr.rel (%p1714) target = $region48
      $region47: #{relational_gene_network.1} parent=43 // pred_region
        %s1717 = smul.u32 8, %s16
        %p1718 = scmp.lt.s32.totalorder %s1717, 63
        %s1719 = scalar_select %p1718, %s1717, 63
        %s1720 = smul.addr %s1719, 8
        %s1721 = scalar_lea.vmem %s4, %s1720
      $region48: #{relational_gene_network.1} parent=43 // pred_fallthru
        _
    $region44: #{relational_gene_network.1} parent=5 // pred_fallthru
      _
  $region6: #{relational_gene_network.1} parent=0 // loop_footer
    %s14 = sadd.s32 1, %s10
  $region7: #{relational_gene_network.1} parent=0 // loop_footer_branch
    %9 = sbr.rel target = $region3
  $region8: #{relational_gene_network.1} parent=0 // loop_exit
    _

</llo_original>
